<compile_context>
chip_gen: v5e
topology: v5e:2x2
jax: 0.10.0
libtpu: 0.0.40
codegen_flags: <defaults>
</compile_context>

<pallas_src>
import functools
import math

import numpy as np
import jax
import jax.numpy as jnp
from jax.experimental import pallas as pl
from jax.experimental.pallas import tpu as pltpu


# ------------------------------ Pallas kernel -------------------------------

def _fused_forward_kernel(cols1_ref, w1_ref, b1_ref, w2_ref, b2_ref,
                          l1w_ref, l1b_ref, l2w_ref, l2b_ref, l3w_ref, l3b_ref,
                          o_ref, im_ref, flat_ref, *, blk):
    """Whole forward pass for one batch block of `blk` samples.

    Row layout of all spatial tensors is r = q*blk + b with q = h*5 + w on the
    5x5 pooled grid (spatial-major), so pooling, the conv2 tap shifts and the
    flatten are all expressible with static, sublane-aligned slices.
    """
    R = 25 * blk

    # ---- Conv1 (k=4, pad=1) + ReLU + 2x2 max-pool --------------------------
    # cols1_ref: (4*R, 16) im2col columns, corner-major.  One MXU pass, then
    # the pool is 3 VPU maxima over the 4 corner slabs.  max/relu commute and
    # the per-channel bias is corner-invariant, so bias+relu go after the max.
    z = jnp.dot(cols1_ref[...], w1_ref[...], preferred_element_type=jnp.float32)
    m = jnp.maximum(jnp.maximum(z[0:R, :], z[R:2 * R, :]),
                    jnp.maximum(z[2 * R:3 * R, :], z[3 * R:4 * R, :]))
    pooled = jnp.maximum(m + b1_ref[...], 0.0)                         # (R, 16)

    # ---- Conv2 (k=3, pad=1) as one im2col matmul ---------------------------
    # Build the (R, 144) im2col matrix in VMEM with static slice copies; rows
    # whose tap falls outside the 5x5 grid stay 0 (== the zero padding).
    im_ref[...] = jnp.zeros_like(im_ref)
    for kh in range(3):
        for kw in range(3):
            t = kh * 3 + kw
            h_lo, h_hi = max(0, 1 - kh), min(5, 6 - kh)   # valid output rows
            w_lo, w_hi = max(0, 1 - kw), min(5, 6 - kw)   # valid output cols
            n = (w_hi - w_lo) * blk
            for h in range(h_lo, h_hi):
                d0 = (h * 5 + w_lo) * blk                            # output q
                s0 = ((h + kh - 1) * 5 + (w_lo + kw - 1)) * blk      # input q
                im_ref[d0:d0 + n, t * 16:(t + 1) * 16] = pooled[s0:s0 + n, :]
    y2 = jnp.maximum(
        jnp.dot(im_ref[...], w2_ref[...], preferred_element_type=jnp.float32)
        + b2_ref[...], 0.0)                                            # (R, 8)

    # ---- Flatten (torch NCHW order folded into l1w) + Linear1 + ReLU -------
    for q in range(25):
        flat_ref[:, q * 8:(q + 1) * 8] = y2[q * blk:(q + 1) * blk, :]
    h1 = jnp.maximum(
        jnp.dot(flat_ref[...], l1w_ref[...], preferred_element_type=jnp.float32)
        + l1b_ref[...], 0.0)                                           # (blk, 100)
    # TODO(synk): Dropout(p=0.2) layers are identity here (inference mode).

    # ---- Linear2 + ReLU, Linear3 + Sigmoid ----------------------------------
    h2 = jnp.maximum(
        jnp.dot(h1, l2w_ref[...], preferred_element_type=jnp.float32)
        + l2b_ref[...], 0.0)                                           # (blk, 40)
    z3 = jnp.dot(h2, l3w_ref[...], preferred_element_type=jnp.float32) + l3b_ref[...]
    o_ref[...] = jax.nn.sigmoid(z3).astype(o_ref.dtype)                # (blk, 128)


# --------------------------- host-side constants -----------------------------

def _conv1_gather_indices(padded_b, blk):
    """Gather indices building conv1 im2col columns, shape (4*25*PB, 16).

    Global row order is (batch_block, corner=dh*2+dw, q=ph*5+pw, local_b), so
    each grid block sees a contiguous (4*25*blk, 16) slab whose four corner
    slabs line up row-for-row for the pool max.  Feature order is (kh, kw)."""
    pb = padded_b
    dh = np.arange(2).reshape(2, 1, 1, 1, 1, 1, 1)
    dw = np.arange(2).reshape(1, 2, 1, 1, 1, 1, 1)
    b = np.arange(pb).reshape(1, 1, pb, 1, 1, 1, 1)
    ph = np.arange(5).reshape(1, 1, 1, 5, 1, 1, 1)
    pw = np.arange(5).reshape(1, 1, 1, 1, 5, 1, 1)
    kh = np.arange(4).reshape(1, 1, 1, 1, 1, 4, 1)
    kw = np.arange(4).reshape(1, 1, 1, 1, 1, 1, 4)
    pix = (2 * ph + dh + kh) * 13 + (2 * pw + dw + kw)
    pix = np.broadcast_to(pix, (2, 2, pb, 5, 5, 4, 4))
    bidx = np.broadcast_to(b, (2, 2, pb, 5, 5, 4, 4))
    nb = pb // blk

    def repack(a):
        a = a.reshape(2, 2, nb, blk, 5, 5, 4, 4)
        # (dh,dw,chunk,local_b,ph,pw,kh,kw) -> (chunk, dh,dw, ph,pw, local_b, kh,kw)
        a = a.transpose(2, 0, 1, 4, 5, 3, 6, 7)
        return a.reshape(nb * 4 * 25 * blk, 16)

    return jnp.asarray(repack(bidx)), jnp.asarray(repack(pix))


def pack_params(p):
    """One-time repack of torch-layout params into kernel-friendly layouts."""
    l3w = jnp.zeros((40, 128), jnp.float32).at[:, :5].set(p["l3_w"].T)
    l3b = jnp.zeros((1, 128), jnp.float32).at[:, :5].set(p["l3_b"].reshape(1, 5))
    return {
        # conv1: (out=16, in*kh*kw=16) -> (feat=kh*4+kw, out)
        "w1": p["c1_w"].reshape(16, 16).T,
        "b1": p["c1_b"].reshape(1, 16),
        # conv2: (out=8, in=16, 3, 3) -> im2col rows (t=kh*3+kw, ic) x (out=8)
        "w2": p["c2_w"].transpose(2, 3, 1, 0).reshape(144, 8),
        "b2": p["c2_b"].reshape(1, 8),
        # l1: torch flatten index oc*25+q  ->  our flat index q*8+oc
        "l1w": p["l1_w"].reshape(100, 8, 25).transpose(2, 1, 0).reshape(200, 100),
        "l1b": p["l1_b"].reshape(1, 100),
        "l2w": p["l2_w"].T,                 # (100, 40)
        "l2b": p["l2_b"].reshape(1, 40),
        "l3w": l3w,                         # (40, 128) lane-padded
        "l3b": l3b,                         # (1, 128)  lane-padded
    }


# ------------------------------ forward pass ---------------------------------

def forward(x, kp, idx_b, idx_p, *, block_batch):
    B = x.shape[0]
    blk = block_batch
    assert blk % 8 == 0, "batch block must be a multiple of 8 (sublane aligned)"
    pb = idx_b.shape[0] // 100          # padded batch baked into the indices
    nb = pb // blk
    R = 25 * blk

    # Pad batch to the block grid, pad spatially (conv1 padding=1), gather the
    # conv1 im2col columns with one fused XLA pad+gather.
    xp = jnp.pad(x[:, 0, :, :], ((0, pb - B), (1, 1), (1, 1)))   # (PB, 13, 13)
    cols1 = xp.reshape(pb, 13 * 13)[idx_b, idx_p]                # (4*25*PB, 16)

    const = lambda i: (0, 0)
    out = pl.pallas_call(
        functools.partial(_fused_forward_kernel, blk=blk),
        out_shape=jax.ShapeDtypeStruct((pb, 128), jnp.float32),
        grid=(nb,),
        in_specs=[
            pl.BlockSpec((4 * R, 16), lambda i: (i, 0)),   # cols1 (per block)
            pl.BlockSpec((16, 16), const),                 # w1
            pl.BlockSpec((1, 16), const),                  # b1
            pl.BlockSpec((144, 8), const),                 # w2 (im2col)
            pl.BlockSpec((1, 8), const),                   # b2
            pl.BlockSpec((200, 100), const),               # l1w
            pl.BlockSpec((1, 100), const),                 # l1b
            pl.BlockSpec((100, 40), const),                # l2w
            pl.BlockSpec((1, 40), const),                  # l2b
            pl.BlockSpec((40, 128), const),                # l3w (lane-padded)
            pl.BlockSpec((1, 128), const),                 # l3b (lane-padded)
        ],
        out_specs=pl.BlockSpec((blk, 128), lambda i: (i, 0)),
        scratch_shapes=[
            pltpu.VMEM((R, 144), jnp.float32),             # conv2 im2col slab
            pltpu.VMEM((blk, 200), jnp.float32),           # flatten slab
        ],
        compiler_params=pltpu.CompilerParams(
            dimension_semantics=("parallel",),             # shard blocks on v7x's 2 TCs
            vmem_limit_bytes=32 * 1024 * 1024),
    )(cols1, kp["w1"], kp["b1"], kp["w2"], kp["b2"],
      kp["l1w"], kp["l1b"], kp["l2w"], kp["l2b"], kp["l3w"], kp["l3b"])
    return out[:B, :5]


# ---------------------------- parameter creation -----------------------------

def xavier_uniform(key, shape, fan_in, fan_out):
    bound = math.sqrt(6.0 / (fan_in + fan_out))
    return jax.random.uniform(key, shape, jnp.float32, -bound, bound)


def default_bias(key, shape, fan_in):
    bound = 1.0 / math.sqrt(fan_in)
    return jax.random.uniform(key, shape, jnp.float32, -bound, bound)


def make_params(key):
    ks = jax.random.split(key, 10)
    return {
        "c1_w": xavier_uniform(ks[0], (16, 1, 4, 4), 1 * 16, 16 * 16),
        "c1_b": default_bias(ks[1], (16,), 1 * 16),
        "c2_w": xavier_uniform(ks[2], (8, 16, 3, 3), 16 * 9, 8 * 9),
        "c2_b": default_bias(ks[3], (8,), 16 * 9),
        "l1_w": xavier_uniform(ks[4], (100, 200), 200, 100),
        "l1_b": default_bias(ks[5], (100,), 200),
        "l2_w": xavier_uniform(ks[6], (40, 100), 100, 40),
        "l2_b": default_bias(ks[7], (40,), 100),
        "l3_w": xavier_uniform(ks[8], (5, 40), 40, 5),
        "l3_b": default_bias(ks[9], (5,), 40),
    }


if __name__ == "__main__":
    key = jax.random.PRNGKey(0)
    k_x, k_p = jax.random.split(key)
    B = 2
    BLK = 8                                    # batch block (multiple of 8)
    # Input consistent with Module.show(): (B, 1, 11, 11).
    x = jax.random.uniform(k_x, (B, 1, 11, 11), jnp.float32)

    params = make_params(k_p)
    kparams = pack_params(params)                       # one-time repack
    padded_b = ((B + BLK - 1) // BLK) * BLK
    idx_b, idx_p = _conv1_gather_indices(padded_b, BLK)  # constant indices

    fwd = jax.jit(functools.partial(forward, block_batch=BLK))
    out = fwd(x, kparams, idx_b, idx_p)
    out = jax.block_until_ready(out)

    assert out.shape == (B, 5), out.shape
    assert bool(jnp.all(jnp.isfinite(out)))
    assert bool(jnp.all((out >= 0.0) & (out <= 1.0)))   # sigmoid range
    print("KERNEL_OK")
</pallas_src>

<mosaic_0001>
module attributes {stable_mosaic.version = 11 : i64} {
  func.func @_fused_forward_kernel(%arg0: i32, %arg1: memref<800x16xf32, #tpu.memory_space<vmem>>, %arg2: memref<16x16xf32, #tpu.memory_space<vmem>>, %arg3: memref<1x16xf32, #tpu.memory_space<vmem>>, %arg4: memref<144x8xf32, #tpu.memory_space<vmem>>, %arg5: memref<1x8xf32, #tpu.memory_space<vmem>>, %arg6: memref<200x100xf32, #tpu.memory_space<vmem>>, %arg7: memref<1x100xf32, #tpu.memory_space<vmem>>, %arg8: memref<100x40xf32, #tpu.memory_space<vmem>>, %arg9: memref<1x40xf32, #tpu.memory_space<vmem>>, %arg10: memref<40x128xf32, #tpu.memory_space<vmem>>, %arg11: memref<1x128xf32, #tpu.memory_space<vmem>>, %arg12: memref<8x128xf32, #tpu.memory_space<vmem>>, %arg13: memref<200x144xf32, #tpu.memory_space<vmem>>, %arg14: memref<8x200xf32, #tpu.memory_space<vmem>>) attributes {dimension_semantics = [#tpu.dimension_semantics<parallel>], iteration_bounds = array<i64: 1>, scalar_prefetch = 0 : i64, scratch_operands = 2 : i64, tpu.core_type = #tpu.core_type<tc>, window_params = [{transform_indices = @transform_0, window_bounds = array<i64: 800, 16>}, {pipeline_mode = #tpu.pipeline_mode<synchronous>, transform_indices = @transform_1, window_bounds = array<i64: 16, 16>}, {pipeline_mode = #tpu.pipeline_mode<synchronous>, transform_indices = @transform_2, window_bounds = array<i64: 1, 16>}, {pipeline_mode = #tpu.pipeline_mode<synchronous>, transform_indices = @transform_3, window_bounds = array<i64: 144, 8>}, {pipeline_mode = #tpu.pipeline_mode<synchronous>, transform_indices = @transform_4, window_bounds = array<i64: 1, 8>}, {pipeline_mode = #tpu.pipeline_mode<synchronous>, transform_indices = @transform_5, window_bounds = array<i64: 200, 100>}, {pipeline_mode = #tpu.pipeline_mode<synchronous>, transform_indices = @transform_6, window_bounds = array<i64: 1, 100>}, {pipeline_mode = #tpu.pipeline_mode<synchronous>, transform_indices = @transform_7, window_bounds = array<i64: 100, 40>}, {pipeline_mode = #tpu.pipeline_mode<synchronous>, transform_indices = @transform_8, window_bounds = array<i64: 1, 40>}, {pipeline_mode = #tpu.pipeline_mode<synchronous>, transform_indices = @transform_9, window_bounds = array<i64: 40, 128>}, {pipeline_mode = #tpu.pipeline_mode<synchronous>, transform_indices = @transform_10, window_bounds = array<i64: 1, 128>}, {transform_indices = @transform_11, window_bounds = array<i64: 8, 128>}]} {
    %c0 = arith.constant 0 : index
    %c0_0 = arith.constant 0 : index
    %0 = vector.load %arg1[%c0, %c0_0] : memref<800x16xf32, #tpu.memory_space<vmem>>, vector<800x16xf32>
    %c0_1 = arith.constant 0 : index
    %c0_2 = arith.constant 0 : index
    %1 = vector.load %arg2[%c0_1, %c0_2] : memref<16x16xf32, #tpu.memory_space<vmem>>, vector<16x16xf32>
    %cst = arith.constant dense<0.000000e+00> : vector<800x16xf32>
    %2 = tpu.matmul %0, %1, %cst {dimension_numbers = #tpu.dot_dimension_numbers<[1], [0], [0], [1], [0, 0, 1, 1], [], []>} : vector<800x16xf32>, vector<16x16xf32>, vector<800x16xf32> -> vector<800x16xf32>
    %3 = vector.extract_strided_slice %2 {offsets = [0, 0], sizes = [200, 16], strides = [1, 1]} : vector<800x16xf32> to vector<200x16xf32>
    %4 = vector.extract_strided_slice %2 {offsets = [200, 0], sizes = [200, 16], strides = [1, 1]} : vector<800x16xf32> to vector<200x16xf32>
    %5 = arith.maximumf %3, %4 : vector<200x16xf32>
    %6 = vector.extract_strided_slice %2 {offsets = [400, 0], sizes = [200, 16], strides = [1, 1]} : vector<800x16xf32> to vector<200x16xf32>
    %7 = vector.extract_strided_slice %2 {offsets = [600, 0], sizes = [200, 16], strides = [1, 1]} : vector<800x16xf32> to vector<200x16xf32>
    %8 = arith.maximumf %6, %7 : vector<200x16xf32>
    %9 = arith.maximumf %5, %8 : vector<200x16xf32>
    %c0_3 = arith.constant 0 : index
    %c0_4 = arith.constant 0 : index
    %10 = vector.load %arg3[%c0_3, %c0_4] : memref<1x16xf32, #tpu.memory_space<vmem>>, vector<1x16xf32>
    %11 = vector.broadcast %10 : vector<1x16xf32> to vector<200x16xf32>
    %12 = arith.addf %9, %11 : vector<200x16xf32>
    %cst_5 = arith.constant 0.000000e+00 : f32
    %13 = vector.broadcast %cst_5 : f32 to vector<200x16xf32>
    %14 = arith.maximumf %12, %13 : vector<200x16xf32>
    %cst_6 = arith.constant 0.000000e+00 : f32
    %15 = vector.broadcast %cst_6 : f32 to vector<200x144xf32>
    %c0_7 = arith.constant 0 : index
    %c0_8 = arith.constant 0 : index
    %16 = vector.load %arg13[%c0_7, %c0_8] : memref<200x144xf32, #tpu.memory_space<vmem>>, vector<200x144xf32>
    tpu.vector_store %arg13[%c0_7, %c0_8], %15 {strides = array<i32>} : memref<200x144xf32, #tpu.memory_space<vmem>>, vector<200x144xf32>,
    %17 = vector.extract_strided_slice %14 {offsets = [0, 0], sizes = [32, 16], strides = [1, 1]} : vector<200x16xf32> to vector<32x16xf32>
    %c48 = arith.constant 48 : index
    %c0_9 = arith.constant 0 : index
    %18 = vector.load %arg13[%c48, %c0_9] : memref<200x144xf32, #tpu.memory_space<vmem>>, vector<32x16xf32>
    tpu.vector_store %arg13[%c48, %c0_9], %17 {strides = array<i32>} : memref<200x144xf32, #tpu.memory_space<vmem>>, vector<32x16xf32>,
    %19 = vector.extract_strided_slice %14 {offsets = [40, 0], sizes = [32, 16], strides = [1, 1]} : vector<200x16xf32> to vector<32x16xf32>
    %c88 = arith.constant 88 : index
    %c0_10 = arith.constant 0 : index
    %20 = vector.load %arg13[%c88, %c0_10] : memref<200x144xf32, #tpu.memory_space<vmem>>, vector<32x16xf32>
    tpu.vector_store %arg13[%c88, %c0_10], %19 {strides = array<i32>} : memref<200x144xf32, #tpu.memory_space<vmem>>, vector<32x16xf32>,
    %21 = vector.extract_strided_slice %14 {offsets = [80, 0], sizes = [32, 16], strides = [1, 1]} : vector<200x16xf32> to vector<32x16xf32>
    %c128 = arith.constant 128 : index
    %c0_11 = arith.constant 0 : index
    %22 = vector.load %arg13[%c128, %c0_11] : memref<200x144xf32, #tpu.memory_space<vmem>>, vector<32x16xf32>
    tpu.vector_store %arg13[%c128, %c0_11], %21 {strides = array<i32>} : memref<200x144xf32, #tpu.memory_space<vmem>>, vector<32x16xf32>,
    %23 = vector.extract_strided_slice %14 {offsets = [120, 0], sizes = [32, 16], strides = [1, 1]} : vector<200x16xf32> to vector<32x16xf32>
    %c168 = arith.constant 168 : index
    %c0_12 = arith.constant 0 : index
    %24 = vector.load %arg13[%c168, %c0_12] : memref<200x144xf32, #tpu.memory_space<vmem>>, vector<32x16xf32>
    tpu.vector_store %arg13[%c168, %c0_12], %23 {strides = array<i32>} : memref<200x144xf32, #tpu.memory_space<vmem>>, vector<32x16xf32>,
    %25 = vector.extract_strided_slice %14 {offsets = [0, 0], sizes = [40, 16], strides = [1, 1]} : vector<200x16xf32> to vector<40x16xf32>
    %c40 = arith.constant 40 : index
    %c16 = arith.constant 16 : index
    %26 = vector.load %arg13[%c40, %c16] : memref<200x144xf32, #tpu.memory_space<vmem>>, vector<40x16xf32>
    tpu.vector_store %arg13[%c40, %c16], %25 {strides = array<i32>} : memref<200x144xf32, #tpu.memory_space<vmem>>, vector<40x16xf32>,
    %27 = vector.extract_strided_slice %14 {offsets = [40, 0], sizes = [40, 16], strides = [1, 1]} : vector<200x16xf32> to vector<40x16xf32>
    %c80 = arith.constant 80 : index
    %c16_13 = arith.constant 16 : index
    %28 = vector.load %arg13[%c80, %c16_13] : memref<200x144xf32, #tpu.memory_space<vmem>>, vector<40x16xf32>
    tpu.vector_store %arg13[%c80, %c16_13], %27 {strides = array<i32>} : memref<200x144xf32, #tpu.memory_space<vmem>>, vector<40x16xf32>,
    %29 = vector.extract_strided_slice %14 {offsets = [80, 0], sizes = [40, 16], strides = [1, 1]} : vector<200x16xf32> to vector<40x16xf32>
    %c120 = arith.constant 120 : index
    %c16_14 = arith.constant 16 : index
    %30 = vector.load %arg13[%c120, %c16_14] : memref<200x144xf32, #tpu.memory_space<vmem>>, vector<40x16xf32>
    tpu.vector_store %arg13[%c120, %c16_14], %29 {strides = array<i32>} : memref<200x144xf32, #tpu.memory_space<vmem>>, vector<40x16xf32>,
    %31 = vector.extract_strided_slice %14 {offsets = [120, 0], sizes = [40, 16], strides = [1, 1]} : vector<200x16xf32> to vector<40x16xf32>
    %c160 = arith.constant 160 : index
    %c16_15 = arith.constant 16 : index
    %32 = vector.load %arg13[%c160, %c16_15] : memref<200x144xf32, #tpu.memory_space<vmem>>, vector<40x16xf32>
    tpu.vector_store %arg13[%c160, %c16_15], %31 {strides = array<i32>} : memref<200x144xf32, #tpu.memory_space<vmem>>, vector<40x16xf32>,
    %33 = vector.extract_strided_slice %14 {offsets = [8, 0], sizes = [32, 16], strides = [1, 1]} : vector<200x16xf32> to vector<32x16xf32>
    %c40_16 = arith.constant 40 : index
    %c32 = arith.constant 32 : index
    %34 = vector.load %arg13[%c40_16, %c32] : memref<200x144xf32, #tpu.memory_space<vmem>>, vector<32x16xf32>
    tpu.vector_store %arg13[%c40_16, %c32], %33 {strides = array<i32>} : memref<200x144xf32, #tpu.memory_space<vmem>>, vector<32x16xf32>,
    %35 = vector.extract_strided_slice %14 {offsets = [48, 0], sizes = [32, 16], strides = [1, 1]} : vector<200x16xf32> to vector<32x16xf32>
    %c80_17 = arith.constant 80 : index
    %c32_18 = arith.constant 32 : index
    %36 = vector.load %arg13[%c80_17, %c32_18] : memref<200x144xf32, #tpu.memory_space<vmem>>, vector<32x16xf32>
    tpu.vector_store %arg13[%c80_17, %c32_18], %35 {strides = array<i32>} : memref<200x144xf32, #tpu.memory_space<vmem>>, vector<32x16xf32>,
    %37 = vector.extract_strided_slice %14 {offsets = [88, 0], sizes = [32, 16], strides = [1, 1]} : vector<200x16xf32> to vector<32x16xf32>
    %c120_19 = arith.constant 120 : index
    %c32_20 = arith.constant 32 : index
    %38 = vector.load %arg13[%c120_19, %c32_20] : memref<200x144xf32, #tpu.memory_space<vmem>>, vector<32x16xf32>
    tpu.vector_store %arg13[%c120_19, %c32_20], %37 {strides = array<i32>} : memref<200x144xf32, #tpu.memory_space<vmem>>, vector<32x16xf32>,
    %39 = vector.extract_strided_slice %14 {offsets = [128, 0], sizes = [32, 16], strides = [1, 1]} : vector<200x16xf32> to vector<32x16xf32>
    %c160_21 = arith.constant 160 : index
    %c32_22 = arith.constant 32 : index
    %40 = vector.load %arg13[%c160_21, %c32_22] : memref<200x144xf32, #tpu.memory_space<vmem>>, vector<32x16xf32>
    tpu.vector_store %arg13[%c160_21, %c32_22], %39 {strides = array<i32>} : memref<200x144xf32, #tpu.memory_space<vmem>>, vector<32x16xf32>,
    %41 = vector.extract_strided_slice %14 {offsets = [0, 0], sizes = [32, 16], strides = [1, 1]} : vector<200x16xf32> to vector<32x16xf32>
    %c8 = arith.constant 8 : index
    %c48_23 = arith.constant 48 : index
    %42 = vector.load %arg13[%c8, %c48_23] : memref<200x144xf32, #tpu.memory_space<vmem>>, vector<32x16xf32>
    tpu.vector_store %arg13[%c8, %c48_23], %41 {strides = array<i32>} : memref<200x144xf32, #tpu.memory_space<vmem>>, vector<32x16xf32>,
    %43 = vector.extract_strided_slice %14 {offsets = [40, 0], sizes = [32, 16], strides = [1, 1]} : vector<200x16xf32> to vector<32x16xf32>
    %c48_24 = arith.constant 48 : index
    %c48_25 = arith.constant 48 : index
    %44 = vector.load %arg13[%c48_24, %c48_25] : memref<200x144xf32, #tpu.memory_space<vmem>>, vector<32x16xf32>
    tpu.vector_store %arg13[%c48_24, %c48_25], %43 {strides = array<i32>} : memref<200x144xf32, #tpu.memory_space<vmem>>, vector<32x16xf32>,
    %45 = vector.extract_strided_slice %14 {offsets = [80, 0], sizes = [32, 16], strides = [1, 1]} : vector<200x16xf32> to vector<32x16xf32>
    %c88_26 = arith.constant 88 : index
    %c48_27 = arith.constant 48 : index
    %46 = vector.load %arg13[%c88_26, %c48_27] : memref<200x144xf32, #tpu.memory_space<vmem>>, vector<32x16xf32>
    tpu.vector_store %arg13[%c88_26, %c48_27], %45 {strides = array<i32>} : memref<200x144xf32, #tpu.memory_space<vmem>>, vector<32x16xf32>,
    %47 = vector.extract_strided_slice %14 {offsets = [120, 0], sizes = [32, 16], strides = [1, 1]} : vector<200x16xf32> to vector<32x16xf32>
    %c128_28 = arith.constant 128 : index
    %c48_29 = arith.constant 48 : index
    %48 = vector.load %arg13[%c128_28, %c48_29] : memref<200x144xf32, #tpu.memory_space<vmem>>, vector<32x16xf32>
    tpu.vector_store %arg13[%c128_28, %c48_29], %47 {strides = array<i32>} : memref<200x144xf32, #tpu.memory_space<vmem>>, vector<32x16xf32>,
    %49 = vector.extract_strided_slice %14 {offsets = [160, 0], sizes = [32, 16], strides = [1, 1]} : vector<200x16xf32> to vector<32x16xf32>
    %c168_30 = arith.constant 168 : index
    %c48_31 = arith.constant 48 : index
    %50 = vector.load %arg13[%c168_30, %c48_31] : memref<200x144xf32, #tpu.memory_space<vmem>>, vector<32x16xf32>
    tpu.vector_store %arg13[%c168_30, %c48_31], %49 {strides = array<i32>} : memref<200x144xf32, #tpu.memory_space<vmem>>, vector<32x16xf32>,
    %51 = vector.extract_strided_slice %14 {offsets = [0, 0], sizes = [40, 16], strides = [1, 1]} : vector<200x16xf32> to vector<40x16xf32>
    %c0_32 = arith.constant 0 : index
    %c64 = arith.constant 64 : index
    %52 = vector.load %arg13[%c0_32, %c64] : memref<200x144xf32, #tpu.memory_space<vmem>>, vector<40x16xf32>
    tpu.vector_store %arg13[%c0_32, %c64], %51 {strides = array<i32>} : memref<200x144xf32, #tpu.memory_space<vmem>>, vector<40x16xf32>,
    %53 = vector.extract_strided_slice %14 {offsets = [40, 0], sizes = [40, 16], strides = [1, 1]} : vector<200x16xf32> to vector<40x16xf32>
    %c40_33 = arith.constant 40 : index
    %c64_34 = arith.constant 64 : index
    %54 = vector.load %arg13[%c40_33, %c64_34] : memref<200x144xf32, #tpu.memory_space<vmem>>, vector<40x16xf32>
    tpu.vector_store %arg13[%c40_33, %c64_34], %53 {strides = array<i32>} : memref<200x144xf32, #tpu.memory_space<vmem>>, vector<40x16xf32>,
    %55 = vector.extract_strided_slice %14 {offsets = [80, 0], sizes = [40, 16], strides = [1, 1]} : vector<200x16xf32> to vector<40x16xf32>
    %c80_35 = arith.constant 80 : index
    %c64_36 = arith.constant 64 : index
    %56 = vector.load %arg13[%c80_35, %c64_36] : memref<200x144xf32, #tpu.memory_space<vmem>>, vector<40x16xf32>
    tpu.vector_store %arg13[%c80_35, %c64_36], %55 {strides = array<i32>} : memref<200x144xf32, #tpu.memory_space<vmem>>, vector<40x16xf32>,
    %57 = vector.extract_strided_slice %14 {offsets = [120, 0], sizes = [40, 16], strides = [1, 1]} : vector<200x16xf32> to vector<40x16xf32>
    %c120_37 = arith.constant 120 : index
    %c64_38 = arith.constant 64 : index
    %58 = vector.load %arg13[%c120_37, %c64_38] : memref<200x144xf32, #tpu.memory_space<vmem>>, vector<40x16xf32>
    tpu.vector_store %arg13[%c120_37, %c64_38], %57 {strides = array<i32>} : memref<200x144xf32, #tpu.memory_space<vmem>>, vector<40x16xf32>,
    %59 = vector.extract_strided_slice %14 {offsets = [160, 0], sizes = [40, 16], strides = [1, 1]} : vector<200x16xf32> to vector<40x16xf32>
    %c160_39 = arith.constant 160 : index
    %c64_40 = arith.constant 64 : index
    %60 = vector.load %arg13[%c160_39, %c64_40] : memref<200x144xf32, #tpu.memory_space<vmem>>, vector<40x16xf32>
    tpu.vector_store %arg13[%c160_39, %c64_40], %59 {strides = array<i32>} : memref<200x144xf32, #tpu.memory_space<vmem>>, vector<40x16xf32>,
    %61 = vector.extract_strided_slice %14 {offsets = [8, 0], sizes = [32, 16], strides = [1, 1]} : vector<200x16xf32> to vector<32x16xf32>
    %c0_41 = arith.constant 0 : index
    %c80_42 = arith.constant 80 : index
    %62 = vector.load %arg13[%c0_41, %c80_42] : memref<200x144xf32, #tpu.memory_space<vmem>>, vector<32x16xf32>
    tpu.vector_store %arg13[%c0_41, %c80_42], %61 {strides = array<i32>} : memref<200x144xf32, #tpu.memory_space<vmem>>, vector<32x16xf32>,
    %63 = vector.extract_strided_slice %14 {offsets = [48, 0], sizes = [32, 16], strides = [1, 1]} : vector<200x16xf32> to vector<32x16xf32>
    %c40_43 = arith.constant 40 : index
    %c80_44 = arith.constant 80 : index
    %64 = vector.load %arg13[%c40_43, %c80_44] : memref<200x144xf32, #tpu.memory_space<vmem>>, vector<32x16xf32>
    tpu.vector_store %arg13[%c40_43, %c80_44], %63 {strides = array<i32>} : memref<200x144xf32, #tpu.memory_space<vmem>>, vector<32x16xf32>,
    %65 = vector.extract_strided_slice %14 {offsets = [88, 0], sizes = [32, 16], strides = [1, 1]} : vector<200x16xf32> to vector<32x16xf32>
    %c80_45 = arith.constant 80 : index
    %c80_46 = arith.constant 80 : index
    %66 = vector.load %arg13[%c80_45, %c80_46] : memref<200x144xf32, #tpu.memory_space<vmem>>, vector<32x16xf32>
    tpu.vector_store %arg13[%c80_45, %c80_46], %65 {strides = array<i32>} : memref<200x144xf32, #tpu.memory_space<vmem>>, vector<32x16xf32>,
    %67 = vector.extract_strided_slice %14 {offsets = [128, 0], sizes = [32, 16], strides = [1, 1]} : vector<200x16xf32> to vector<32x16xf32>
    %c120_47 = arith.constant 120 : index
    %c80_48 = arith.constant 80 : index
    %68 = vector.load %arg13[%c120_47, %c80_48] : memref<200x144xf32, #tpu.memory_space<vmem>>, vector<32x16xf32>
    tpu.vector_store %arg13[%c120_47, %c80_48], %67 {strides = array<i32>} : memref<200x144xf32, #tpu.memory_space<vmem>>, vector<32x16xf32>,
    %69 = vector.extract_strided_slice %14 {offsets = [168, 0], sizes = [32, 16], strides = [1, 1]} : vector<200x16xf32> to vector<32x16xf32>
    %c160_49 = arith.constant 160 : index
    %c80_50 = arith.constant 80 : index
    %70 = vector.load %arg13[%c160_49, %c80_50] : memref<200x144xf32, #tpu.memory_space<vmem>>, vector<32x16xf32>
    tpu.vector_store %arg13[%c160_49, %c80_50], %69 {strides = array<i32>} : memref<200x144xf32, #tpu.memory_space<vmem>>, vector<32x16xf32>,
    %71 = vector.extract_strided_slice %14 {offsets = [40, 0], sizes = [32, 16], strides = [1, 1]} : vector<200x16xf32> to vector<32x16xf32>
    %c8_51 = arith.constant 8 : index
    %c96 = arith.constant 96 : index
    %72 = vector.load %arg13[%c8_51, %c96] : memref<200x144xf32, #tpu.memory_space<vmem>>, vector<32x16xf32>
    tpu.vector_store %arg13[%c8_51, %c96], %71 {strides = array<i32>} : memref<200x144xf32, #tpu.memory_space<vmem>>, vector<32x16xf32>,
    %73 = vector.extract_strided_slice %14 {offsets = [80, 0], sizes = [32, 16], strides = [1, 1]} : vector<200x16xf32> to vector<32x16xf32>
    %c48_52 = arith.constant 48 : index
    %c96_53 = arith.constant 96 : index
    %74 = vector.load %arg13[%c48_52, %c96_53] : memref<200x144xf32, #tpu.memory_space<vmem>>, vector<32x16xf32>
    tpu.vector_store %arg13[%c48_52, %c96_53], %73 {strides = array<i32>} : memref<200x144xf32, #tpu.memory_space<vmem>>, vector<32x16xf32>,
    %75 = vector.extract_strided_slice %14 {offsets = [120, 0], sizes = [32, 16], strides = [1, 1]} : vector<200x16xf32> to vector<32x16xf32>
    %c88_54 = arith.constant 88 : index
    %c96_55 = arith.constant 96 : index
    %76 = vector.load %arg13[%c88_54, %c96_55] : memref<200x144xf32, #tpu.memory_space<vmem>>, vector<32x16xf32>
    tpu.vector_store %arg13[%c88_54, %c96_55], %75 {strides = array<i32>} : memref<200x144xf32, #tpu.memory_space<vmem>>, vector<32x16xf32>,
    %77 = vector.extract_strided_slice %14 {offsets = [160, 0], sizes = [32, 16], strides = [1, 1]} : vector<200x16xf32> to vector<32x16xf32>
    %c128_56 = arith.constant 128 : index
    %c96_57 = arith.constant 96 : index
    %78 = vector.load %arg13[%c128_56, %c96_57] : memref<200x144xf32, #tpu.memory_space<vmem>>, vector<32x16xf32>
    tpu.vector_store %arg13[%c128_56, %c96_57], %77 {strides = array<i32>} : memref<200x144xf32, #tpu.memory_space<vmem>>, vector<32x16xf32>,
    %79 = vector.extract_strided_slice %14 {offsets = [40, 0], sizes = [40, 16], strides = [1, 1]} : vector<200x16xf32> to vector<40x16xf32>
    %c0_58 = arith.constant 0 : index
    %c112 = arith.constant 112 : index
    %80 = vector.load %arg13[%c0_58, %c112] : memref<200x144xf32, #tpu.memory_space<vmem>>, vector<40x16xf32>
    tpu.vector_store %arg13[%c0_58, %c112], %79 {strides = array<i32>} : memref<200x144xf32, #tpu.memory_space<vmem>>, vector<40x16xf32>,
    %81 = vector.extract_strided_slice %14 {offsets = [80, 0], sizes = [40, 16], strides = [1, 1]} : vector<200x16xf32> to vector<40x16xf32>
    %c40_59 = arith.constant 40 : index
    %c112_60 = arith.constant 112 : index
    %82 = vector.load %arg13[%c40_59, %c112_60] : memref<200x144xf32, #tpu.memory_space<vmem>>, vector<40x16xf32>
    tpu.vector_store %arg13[%c40_59, %c112_60], %81 {strides = array<i32>} : memref<200x144xf32, #tpu.memory_space<vmem>>, vector<40x16xf32>,
    %83 = vector.extract_strided_slice %14 {offsets = [120, 0], sizes = [40, 16], strides = [1, 1]} : vector<200x16xf32> to vector<40x16xf32>
    %c80_61 = arith.constant 80 : index
    %c112_62 = arith.constant 112 : index
    %84 = vector.load %arg13[%c80_61, %c112_62] : memref<200x144xf32, #tpu.memory_space<vmem>>, vector<40x16xf32>
    tpu.vector_store %arg13[%c80_61, %c112_62], %83 {strides = array<i32>} : memref<200x144xf32, #tpu.memory_space<vmem>>, vector<40x16xf32>,
    %85 = vector.extract_strided_slice %14 {offsets = [160, 0], sizes = [40, 16], strides = [1, 1]} : vector<200x16xf32> to vector<40x16xf32>
    %c120_63 = arith.constant 120 : index
    %c112_64 = arith.constant 112 : index
    %86 = vector.load %arg13[%c120_63, %c112_64] : memref<200x144xf32, #tpu.memory_space<vmem>>, vector<40x16xf32>
    tpu.vector_store %arg13[%c120_63, %c112_64], %85 {strides = array<i32>} : memref<200x144xf32, #tpu.memory_space<vmem>>, vector<40x16xf32>,
    %87 = vector.extract_strided_slice %14 {offsets = [48, 0], sizes = [32, 16], strides = [1, 1]} : vector<200x16xf32> to vector<32x16xf32>
    %c0_65 = arith.constant 0 : index
    %c128_66 = arith.constant 128 : index
    %88 = vector.load %arg13[%c0_65, %c128_66] : memref<200x144xf32, #tpu.memory_space<vmem>>, vector<32x16xf32>
    tpu.vector_store %arg13[%c0_65, %c128_66], %87 {strides = array<i32>} : memref<200x144xf32, #tpu.memory_space<vmem>>, vector<32x16xf32>,
    %89 = vector.extract_strided_slice %14 {offsets = [88, 0], sizes = [32, 16], strides = [1, 1]} : vector<200x16xf32> to vector<32x16xf32>
    %c40_67 = arith.constant 40 : index
    %c128_68 = arith.constant 128 : index
    %90 = vector.load %arg13[%c40_67, %c128_68] : memref<200x144xf32, #tpu.memory_space<vmem>>, vector<32x16xf32>
    tpu.vector_store %arg13[%c40_67, %c128_68], %89 {strides = array<i32>} : memref<200x144xf32, #tpu.memory_space<vmem>>, vector<32x16xf32>,
    %91 = vector.extract_strided_slice %14 {offsets = [128, 0], sizes = [32, 16], strides = [1, 1]} : vector<200x16xf32> to vector<32x16xf32>
    %c80_69 = arith.constant 80 : index
    %c128_70 = arith.constant 128 : index
    %92 = vector.load %arg13[%c80_69, %c128_70] : memref<200x144xf32, #tpu.memory_space<vmem>>, vector<32x16xf32>
    tpu.vector_store %arg13[%c80_69, %c128_70], %91 {strides = array<i32>} : memref<200x144xf32, #tpu.memory_space<vmem>>, vector<32x16xf32>,
    %93 = vector.extract_strided_slice %14 {offsets = [168, 0], sizes = [32, 16], strides = [1, 1]} : vector<200x16xf32> to vector<32x16xf32>
    %c120_71 = arith.constant 120 : index
    %c128_72 = arith.constant 128 : index
    %94 = vector.load %arg13[%c120_71, %c128_72] : memref<200x144xf32, #tpu.memory_space<vmem>>, vector<32x16xf32>
    tpu.vector_store %arg13[%c120_71, %c128_72], %93 {strides = array<i32>} : memref<200x144xf32, #tpu.memory_space<vmem>>, vector<32x16xf32>,
    %c0_73 = arith.constant 0 : index
    %c0_74 = arith.constant 0 : index
    %95 = vector.load %arg13[%c0_73, %c0_74] : memref<200x144xf32, #tpu.memory_space<vmem>>, vector<200x144xf32>
    %c0_75 = arith.constant 0 : index
    %c0_76 = arith.constant 0 : index
    %96 = vector.load %arg4[%c0_75, %c0_76] : memref<144x8xf32, #tpu.memory_space<vmem>>, vector<144x8xf32>
    %cst_77 = arith.constant dense<0.000000e+00> : vector<200x8xf32>
    %97 = tpu.matmul %95, %96, %cst_77 {dimension_numbers = #tpu.dot_dimension_numbers<[1], [0], [0], [1], [0, 0, 1, 1], [], []>} : vector<200x144xf32>, vector<144x8xf32>, vector<200x8xf32> -> vector<200x8xf32>
    %c0_78 = arith.constant 0 : index
    %c0_79 = arith.constant 0 : index
    %98 = vector.load %arg5[%c0_78, %c0_79] : memref<1x8xf32, #tpu.memory_space<vmem>>, vector<1x8xf32>
    %99 = vector.broadcast %98 : vector<1x8xf32> to vector<200x8xf32>
    %100 = arith.addf %97, %99 : vector<200x8xf32>
    %cst_80 = arith.constant 0.000000e+00 : f32
    %101 = vector.broadcast %cst_80 : f32 to vector<200x8xf32>
    %102 = arith.maximumf %100, %101 : vector<200x8xf32>
    %103 = vector.extract_strided_slice %102 {offsets = [0, 0], sizes = [8, 8], strides = [1, 1]} : vector<200x8xf32> to vector<8x8xf32>
    %c0_81 = arith.constant 0 : index
    %c0_82 = arith.constant 0 : index
    %104 = vector.load %arg14[%c0_81, %c0_82] : memref<8x200xf32, #tpu.memory_space<vmem>>, vector<8x8xf32>
    tpu.vector_store %arg14[%c0_81, %c0_82], %103 {strides = array<i32>} : memref<8x200xf32, #tpu.memory_space<vmem>>, vector<8x8xf32>,
    %105 = vector.extract_strided_slice %102 {offsets = [8, 0], sizes = [8, 8], strides = [1, 1]} : vector<200x8xf32> to vector<8x8xf32>
    %c0_83 = arith.constant 0 : index
    %c8_84 = arith.constant 8 : index
    %106 = vector.load %arg14[%c0_83, %c8_84] : memref<8x200xf32, #tpu.memory_space<vmem>>, vector<8x8xf32>
    tpu.vector_store %arg14[%c0_83, %c8_84], %105 {strides = array<i32>} : memref<8x200xf32, #tpu.memory_space<vmem>>, vector<8x8xf32>,
    %107 = vector.extract_strided_slice %102 {offsets = [16, 0], sizes = [8, 8], strides = [1, 1]} : vector<200x8xf32> to vector<8x8xf32>
    %c0_85 = arith.constant 0 : index
    %c16_86 = arith.constant 16 : index
    %108 = vector.load %arg14[%c0_85, %c16_86] : memref<8x200xf32, #tpu.memory_space<vmem>>, vector<8x8xf32>
    tpu.vector_store %arg14[%c0_85, %c16_86], %107 {strides = array<i32>} : memref<8x200xf32, #tpu.memory_space<vmem>>, vector<8x8xf32>,
    %109 = vector.extract_strided_slice %102 {offsets = [24, 0], sizes = [8, 8], strides = [1, 1]} : vector<200x8xf32> to vector<8x8xf32>
    %c0_87 = arith.constant 0 : index
    %c24 = arith.constant 24 : index
    %110 = vector.load %arg14[%c0_87, %c24] : memref<8x200xf32, #tpu.memory_space<vmem>>, vector<8x8xf32>
    tpu.vector_store %arg14[%c0_87, %c24], %109 {strides = array<i32>} : memref<8x200xf32, #tpu.memory_space<vmem>>, vector<8x8xf32>,
    %111 = vector.extract_strided_slice %102 {offsets = [32, 0], sizes = [8, 8], strides = [1, 1]} : vector<200x8xf32> to vector<8x8xf32>
    %c0_88 = arith.constant 0 : index
    %c32_89 = arith.constant 32 : index
    %112 = vector.load %arg14[%c0_88, %c32_89] : memref<8x200xf32, #tpu.memory_space<vmem>>, vector<8x8xf32>
    tpu.vector_store %arg14[%c0_88, %c32_89], %111 {strides = array<i32>} : memref<8x200xf32, #tpu.memory_space<vmem>>, vector<8x8xf32>,
    %113 = vector.extract_strided_slice %102 {offsets = [40, 0], sizes = [8, 8], strides = [1, 1]} : vector<200x8xf32> to vector<8x8xf32>
    %c0_90 = arith.constant 0 : index
    %c40_91 = arith.constant 40 : index
    %114 = vector.load %arg14[%c0_90, %c40_91] : memref<8x200xf32, #tpu.memory_space<vmem>>, vector<8x8xf32>
    tpu.vector_store %arg14[%c0_90, %c40_91], %113 {strides = array<i32>} : memref<8x200xf32, #tpu.memory_space<vmem>>, vector<8x8xf32>,
    %115 = vector.extract_strided_slice %102 {offsets = [48, 0], sizes = [8, 8], strides = [1, 1]} : vector<200x8xf32> to vector<8x8xf32>
    %c0_92 = arith.constant 0 : index
    %c48_93 = arith.constant 48 : index
    %116 = vector.load %arg14[%c0_92, %c48_93] : memref<8x200xf32, #tpu.memory_space<vmem>>, vector<8x8xf32>
    tpu.vector_store %arg14[%c0_92, %c48_93], %115 {strides = array<i32>} : memref<8x200xf32, #tpu.memory_space<vmem>>, vector<8x8xf32>,
    %117 = vector.extract_strided_slice %102 {offsets = [56, 0], sizes = [8, 8], strides = [1, 1]} : vector<200x8xf32> to vector<8x8xf32>
    %c0_94 = arith.constant 0 : index
    %c56 = arith.constant 56 : index
    %118 = vector.load %arg14[%c0_94, %c56] : memref<8x200xf32, #tpu.memory_space<vmem>>, vector<8x8xf32>
    tpu.vector_store %arg14[%c0_94, %c56], %117 {strides = array<i32>} : memref<8x200xf32, #tpu.memory_space<vmem>>, vector<8x8xf32>,
    %119 = vector.extract_strided_slice %102 {offsets = [64, 0], sizes = [8, 8], strides = [1, 1]} : vector<200x8xf32> to vector<8x8xf32>
    %c0_95 = arith.constant 0 : index
    %c64_96 = arith.constant 64 : index
    %120 = vector.load %arg14[%c0_95, %c64_96] : memref<8x200xf32, #tpu.memory_space<vmem>>, vector<8x8xf32>
    tpu.vector_store %arg14[%c0_95, %c64_96], %119 {strides = array<i32>} : memref<8x200xf32, #tpu.memory_space<vmem>>, vector<8x8xf32>,
    %121 = vector.extract_strided_slice %102 {offsets = [72, 0], sizes = [8, 8], strides = [1, 1]} : vector<200x8xf32> to vector<8x8xf32>
    %c0_97 = arith.constant 0 : index
    %c72 = arith.constant 72 : index
    %122 = vector.load %arg14[%c0_97, %c72] : memref<8x200xf32, #tpu.memory_space<vmem>>, vector<8x8xf32>
    tpu.vector_store %arg14[%c0_97, %c72], %121 {strides = array<i32>} : memref<8x200xf32, #tpu.memory_space<vmem>>, vector<8x8xf32>,
    %123 = vector.extract_strided_slice %102 {offsets = [80, 0], sizes = [8, 8], strides = [1, 1]} : vector<200x8xf32> to vector<8x8xf32>
    %c0_98 = arith.constant 0 : index
    %c80_99 = arith.constant 80 : index
    %124 = vector.load %arg14[%c0_98, %c80_99] : memref<8x200xf32, #tpu.memory_space<vmem>>, vector<8x8xf32>
    tpu.vector_store %arg14[%c0_98, %c80_99], %123 {strides = array<i32>} : memref<8x200xf32, #tpu.memory_space<vmem>>, vector<8x8xf32>,
    %125 = vector.extract_strided_slice %102 {offsets = [88, 0], sizes = [8, 8], strides = [1, 1]} : vector<200x8xf32> to vector<8x8xf32>
    %c0_100 = arith.constant 0 : index
    %c88_101 = arith.constant 88 : index
    %126 = vector.load %arg14[%c0_100, %c88_101] : memref<8x200xf32, #tpu.memory_space<vmem>>, vector<8x8xf32>
    tpu.vector_store %arg14[%c0_100, %c88_101], %125 {strides = array<i32>} : memref<8x200xf32, #tpu.memory_space<vmem>>, vector<8x8xf32>,
    %127 = vector.extract_strided_slice %102 {offsets = [96, 0], sizes = [8, 8], strides = [1, 1]} : vector<200x8xf32> to vector<8x8xf32>
    %c0_102 = arith.constant 0 : index
    %c96_103 = arith.constant 96 : index
    %128 = vector.load %arg14[%c0_102, %c96_103] : memref<8x200xf32, #tpu.memory_space<vmem>>, vector<8x8xf32>
    tpu.vector_store %arg14[%c0_102, %c96_103], %127 {strides = array<i32>} : memref<8x200xf32, #tpu.memory_space<vmem>>, vector<8x8xf32>,
    %129 = vector.extract_strided_slice %102 {offsets = [104, 0], sizes = [8, 8], strides = [1, 1]} : vector<200x8xf32> to vector<8x8xf32>
    %c0_104 = arith.constant 0 : index
    %c104 = arith.constant 104 : index
    %130 = vector.load %arg14[%c0_104, %c104] : memref<8x200xf32, #tpu.memory_space<vmem>>, vector<8x8xf32>
    tpu.vector_store %arg14[%c0_104, %c104], %129 {strides = array<i32>} : memref<8x200xf32, #tpu.memory_space<vmem>>, vector<8x8xf32>,
    %131 = vector.extract_strided_slice %102 {offsets = [112, 0], sizes = [8, 8], strides = [1, 1]} : vector<200x8xf32> to vector<8x8xf32>
    %c0_105 = arith.constant 0 : index
    %c112_106 = arith.constant 112 : index
    %132 = vector.load %arg14[%c0_105, %c112_106] : memref<8x200xf32, #tpu.memory_space<vmem>>, vector<8x8xf32>
    tpu.vector_store %arg14[%c0_105, %c112_106], %131 {strides = array<i32>} : memref<8x200xf32, #tpu.memory_space<vmem>>, vector<8x8xf32>,
    %133 = vector.extract_strided_slice %102 {offsets = [120, 0], sizes = [8, 8], strides = [1, 1]} : vector<200x8xf32> to vector<8x8xf32>
    %c0_107 = arith.constant 0 : index
    %c120_108 = arith.constant 120 : index
    %134 = vector.load %arg14[%c0_107, %c120_108] : memref<8x200xf32, #tpu.memory_space<vmem>>, vector<8x8xf32>
    tpu.vector_store %arg14[%c0_107, %c120_108], %133 {strides = array<i32>} : memref<8x200xf32, #tpu.memory_space<vmem>>, vector<8x8xf32>,
    %135 = vector.extract_strided_slice %102 {offsets = [128, 0], sizes = [8, 8], strides = [1, 1]} : vector<200x8xf32> to vector<8x8xf32>
    %c0_109 = arith.constant 0 : index
    %c128_110 = arith.constant 128 : index
    %136 = vector.load %arg14[%c0_109, %c128_110] : memref<8x200xf32, #tpu.memory_space<vmem>>, vector<8x8xf32>
    tpu.vector_store %arg14[%c0_109, %c128_110], %135 {strides = array<i32>} : memref<8x200xf32, #tpu.memory_space<vmem>>, vector<8x8xf32>,
    %137 = vector.extract_strided_slice %102 {offsets = [136, 0], sizes = [8, 8], strides = [1, 1]} : vector<200x8xf32> to vector<8x8xf32>
    %c0_111 = arith.constant 0 : index
    %c136 = arith.constant 136 : index
    %138 = vector.load %arg14[%c0_111, %c136] : memref<8x200xf32, #tpu.memory_space<vmem>>, vector<8x8xf32>
    tpu.vector_store %arg14[%c0_111, %c136], %137 {strides = array<i32>} : memref<8x200xf32, #tpu.memory_space<vmem>>, vector<8x8xf32>,
    %139 = vector.extract_strided_slice %102 {offsets = [144, 0], sizes = [8, 8], strides = [1, 1]} : vector<200x8xf32> to vector<8x8xf32>
    %c0_112 = arith.constant 0 : index
    %c144 = arith.constant 144 : index
    %140 = vector.load %arg14[%c0_112, %c144] : memref<8x200xf32, #tpu.memory_space<vmem>>, vector<8x8xf32>
    tpu.vector_store %arg14[%c0_112, %c144], %139 {strides = array<i32>} : memref<8x200xf32, #tpu.memory_space<vmem>>, vector<8x8xf32>,
    %141 = vector.extract_strided_slice %102 {offsets = [152, 0], sizes = [8, 8], strides = [1, 1]} : vector<200x8xf32> to vector<8x8xf32>
    %c0_113 = arith.constant 0 : index
    %c152 = arith.constant 152 : index
    %142 = vector.load %arg14[%c0_113, %c152] : memref<8x200xf32, #tpu.memory_space<vmem>>, vector<8x8xf32>
    tpu.vector_store %arg14[%c0_113, %c152], %141 {strides = array<i32>} : memref<8x200xf32, #tpu.memory_space<vmem>>, vector<8x8xf32>,
    %143 = vector.extract_strided_slice %102 {offsets = [160, 0], sizes = [8, 8], strides = [1, 1]} : vector<200x8xf32> to vector<8x8xf32>
    %c0_114 = arith.constant 0 : index
    %c160_115 = arith.constant 160 : index
    %144 = vector.load %arg14[%c0_114, %c160_115] : memref<8x200xf32, #tpu.memory_space<vmem>>, vector<8x8xf32>
    tpu.vector_store %arg14[%c0_114, %c160_115], %143 {strides = array<i32>} : memref<8x200xf32, #tpu.memory_space<vmem>>, vector<8x8xf32>,
    %145 = vector.extract_strided_slice %102 {offsets = [168, 0], sizes = [8, 8], strides = [1, 1]} : vector<200x8xf32> to vector<8x8xf32>
    %c0_116 = arith.constant 0 : index
    %c168_117 = arith.constant 168 : index
    %146 = vector.load %arg14[%c0_116, %c168_117] : memref<8x200xf32, #tpu.memory_space<vmem>>, vector<8x8xf32>
    tpu.vector_store %arg14[%c0_116, %c168_117], %145 {strides = array<i32>} : memref<8x200xf32, #tpu.memory_space<vmem>>, vector<8x8xf32>,
    %147 = vector.extract_strided_slice %102 {offsets = [176, 0], sizes = [8, 8], strides = [1, 1]} : vector<200x8xf32> to vector<8x8xf32>
    %c0_118 = arith.constant 0 : index
    %c176 = arith.constant 176 : index
    %148 = vector.load %arg14[%c0_118, %c176] : memref<8x200xf32, #tpu.memory_space<vmem>>, vector<8x8xf32>
    tpu.vector_store %arg14[%c0_118, %c176], %147 {strides = array<i32>} : memref<8x200xf32, #tpu.memory_space<vmem>>, vector<8x8xf32>,
    %149 = vector.extract_strided_slice %102 {offsets = [184, 0], sizes = [8, 8], strides = [1, 1]} : vector<200x8xf32> to vector<8x8xf32>
    %c0_119 = arith.constant 0 : index
    %c184 = arith.constant 184 : index
    %150 = vector.load %arg14[%c0_119, %c184] : memref<8x200xf32, #tpu.memory_space<vmem>>, vector<8x8xf32>
    tpu.vector_store %arg14[%c0_119, %c184], %149 {strides = array<i32>} : memref<8x200xf32, #tpu.memory_space<vmem>>, vector<8x8xf32>,
    %151 = vector.extract_strided_slice %102 {offsets = [192, 0], sizes = [8, 8], strides = [1, 1]} : vector<200x8xf32> to vector<8x8xf32>
    %c0_120 = arith.constant 0 : index
    %c192 = arith.constant 192 : index
    %152 = vector.load %arg14[%c0_120, %c192] : memref<8x200xf32, #tpu.memory_space<vmem>>, vector<8x8xf32>
    tpu.vector_store %arg14[%c0_120, %c192], %151 {strides = array<i32>} : memref<8x200xf32, #tpu.memory_space<vmem>>, vector<8x8xf32>,
    %c0_121 = arith.constant 0 : index
    %c0_122 = arith.constant 0 : index
    %153 = vector.load %arg14[%c0_121, %c0_122] : memref<8x200xf32, #tpu.memory_space<vmem>>, vector<8x200xf32>
    %c0_123 = arith.constant 0 : index
    %c0_124 = arith.constant 0 : index
    %154 = vector.load %arg6[%c0_123, %c0_124] : memref<200x100xf32, #tpu.memory_space<vmem>>, vector<200x100xf32>
    %cst_125 = arith.constant dense<0.000000e+00> : vector<8x100xf32>
    %155 = tpu.matmul %153, %154, %cst_125 {dimension_numbers = #tpu.dot_dimension_numbers<[1], [0], [0], [1], [0, 0, 1, 1], [], []>} : vector<8x200xf32>, vector<200x100xf32>, vector<8x100xf32> -> vector<8x100xf32>
    %c0_126 = arith.constant 0 : index
    %c0_127 = arith.constant 0 : index
    %156 = vector.load %arg7[%c0_126, %c0_127] : memref<1x100xf32, #tpu.memory_space<vmem>>, vector<1x100xf32>
    %157 = vector.broadcast %156 : vector<1x100xf32> to vector<8x100xf32>
    %158 = arith.addf %155, %157 : vector<8x100xf32>
    %cst_128 = arith.constant 0.000000e+00 : f32
    %159 = vector.broadcast %cst_128 : f32 to vector<8x100xf32>
    %160 = arith.maximumf %158, %159 : vector<8x100xf32>
    %c0_129 = arith.constant 0 : index
    %c0_130 = arith.constant 0 : index
    %161 = vector.load %arg8[%c0_129, %c0_130] : memref<100x40xf32, #tpu.memory_space<vmem>>, vector<100x40xf32>
    %cst_131 = arith.constant dense<0.000000e+00> : vector<8x40xf32>
    %162 = tpu.matmul %160, %161, %cst_131 {dimension_numbers = #tpu.dot_dimension_numbers<[1], [0], [0], [1], [0, 0, 1, 1], [], []>} : vector<8x100xf32>, vector<100x40xf32>, vector<8x40xf32> -> vector<8x40xf32>
    %c0_132 = arith.constant 0 : index
    %c0_133 = arith.constant 0 : index
    %163 = vector.load %arg9[%c0_132, %c0_133] : memref<1x40xf32, #tpu.memory_space<vmem>>, vector<1x40xf32>
    %164 = vector.broadcast %163 : vector<1x40xf32> to vector<8x40xf32>
    %165 = arith.addf %162, %164 : vector<8x40xf32>
    %cst_134 = arith.constant 0.000000e+00 : f32
    %166 = vector.broadcast %cst_134 : f32 to vector<8x40xf32>
    %167 = arith.maximumf %165, %166 : vector<8x40xf32>
    %c0_135 = arith.constant 0 : index
    %c0_136 = arith.constant 0 : index
    %168 = vector.load %arg10[%c0_135, %c0_136] : memref<40x128xf32, #tpu.memory_space<vmem>>, vector<40x128xf32>
    %cst_137 = arith.constant dense<0.000000e+00> : vector<8x128xf32>
    %169 = tpu.matmul %167, %168, %cst_137 {dimension_numbers = #tpu.dot_dimension_numbers<[1], [0], [0], [1], [0, 0, 1, 1], [], []>} : vector<8x40xf32>, vector<40x128xf32>, vector<8x128xf32> -> vector<8x128xf32>
    %c0_138 = arith.constant 0 : index
    %c0_139 = arith.constant 0 : index
    %170 = vector.load %arg11[%c0_138, %c0_139] : memref<1x128xf32, #tpu.memory_space<vmem>>, vector<1x128xf32>
    %171 = vector.broadcast %170 : vector<1x128xf32> to vector<8x128xf32>
    %172 = arith.addf %169, %171 : vector<8x128xf32>
    %173 = arith.negf %172 : vector<8x128xf32>
    %174 = math.exp %173 : vector<8x128xf32>
    %cst_140 = arith.constant 1.000000e+00 : f32
    %175 = vector.broadcast %cst_140 : f32 to vector<8x128xf32>
    %176 = arith.addf %175, %174 : vector<8x128xf32>
    %177 = arith.divf %175, %176 : vector<8x128xf32>
    %c0_141 = arith.constant 0 : index
    %c0_142 = arith.constant 0 : index
    %178 = vector.load %arg12[%c0_141, %c0_142] : memref<8x128xf32, #tpu.memory_space<vmem>>, vector<8x128xf32>
    tpu.vector_store %arg12[%c0_141, %c0_142], %177 {strides = array<i32>} : memref<8x128xf32, #tpu.memory_space<vmem>>, vector<8x128xf32>,
    return
  }
  func.func @transform_0(%arg0: i32) -> (i32, i32) {
    %c0_i32 = arith.constant 0 : i32
    %c0_i32_0 = arith.constant 0 : i32
    return %arg0, %c0_i32 : i32, i32
  }
  func.func @transform_1(%arg0: i32) -> (i32, i32) {
    %c0_i32 = arith.constant 0 : i32
    %c0_i32_0 = arith.constant 0 : i32
    %c0_i32_1 = arith.constant 0 : i32
    return %c0_i32, %c0_i32_0 : i32, i32
  }
  func.func @transform_2(%arg0: i32) -> (i32, i32) {
    %c0_i32 = arith.constant 0 : i32
    %c0_i32_0 = arith.constant 0 : i32
    %c0_i32_1 = arith.constant 0 : i32
    return %c0_i32, %c0_i32_0 : i32, i32
  }
  func.func @transform_3(%arg0: i32) -> (i32, i32) {
    %c0_i32 = arith.constant 0 : i32
    %c0_i32_0 = arith.constant 0 : i32
    %c0_i32_1 = arith.constant 0 : i32
    return %c0_i32, %c0_i32_0 : i32, i32
  }
  func.func @transform_4(%arg0: i32) -> (i32, i32) {
    %c0_i32 = arith.constant 0 : i32
    %c0_i32_0 = arith.constant 0 : i32
    %c0_i32_1 = arith.constant 0 : i32
    return %c0_i32, %c0_i32_0 : i32, i32
  }
  func.func @transform_5(%arg0: i32) -> (i32, i32) {
    %c0_i32 = arith.constant 0 : i32
    %c0_i32_0 = arith.constant 0 : i32
    %c0_i32_1 = arith.constant 0 : i32
    return %c0_i32, %c0_i32_0 : i32, i32
  }
  func.func @transform_6(%arg0: i32) -> (i32, i32) {
    %c0_i32 = arith.constant 0 : i32
    %c0_i32_0 = arith.constant 0 : i32
    %c0_i32_1 = arith.constant 0 : i32
    return %c0_i32, %c0_i32_0 : i32, i32
  }
  func.func @transform_7(%arg0: i32) -> (i32, i32) {
    %c0_i32 = arith.constant 0 : i32
    %c0_i32_0 = arith.constant 0 : i32
    %c0_i32_1 = arith.constant 0 : i32
    return %c0_i32, %c0_i32_0 : i32, i32
  }
  func.func @transform_8(%arg0: i32) -> (i32, i32) {
    %c0_i32 = arith.constant 0 : i32
    %c0_i32_0 = arith.constant 0 : i32
    %c0_i32_1 = arith.constant 0 : i32
    return %c0_i32, %c0_i32_0 : i32, i32
  }
  func.func @transform_9(%arg0: i32) -> (i32, i32) {
    %c0_i32 = arith.constant 0 : i32
    %c0_i32_0 = arith.constant 0 : i32
    %c0_i32_1 = arith.constant 0 : i32
    return %c0_i32, %c0_i32_0 : i32, i32
  }
  func.func @transform_10(%arg0: i32) -> (i32, i32) {
    %c0_i32 = arith.constant 0 : i32
    %c0_i32_0 = arith.constant 0 : i32
    %c0_i32_1 = arith.constant 0 : i32
    return %c0_i32, %c0_i32_0 : i32, i32
  }
  func.func @transform_11(%arg0: i32) -> (i32, i32) {
    %c0_i32 = arith.constant 0 : i32
    %c0_i32_0 = arith.constant 0 : i32
    return %arg0, %c0_i32 : i32, i32
  }
}

</mosaic_0001>

<llo_original>
// kernel: forward.1
$region0: #{forward.1}
  #allocation0 [shape = 'u32[]', space=smem, size = 0x4, offset = 0x4, fixed_abs, tag = 'smem constant byte address 0x4 - core index']
  #allocation1 [shape = 'u32[72,128]{1,0:T(1,128)}', space=vmem, size = 0x9000, scoped, tag = 'internal scratch']
  #allocation2 [shape = 'f32[200,144]{1,0:T(8,128)}', space=vmem, size = 0x32000, scoped, tag = 'scratch operand']
  #allocation3 [shape = 'f32[8,200]{1,0:T(8,128)}', space=vmem, size = 0x2000, scoped, tag = 'scratch operand']
  %s0 = inlined_call_operand.vmem [shape: f32[800,16], index: 0, kind: input, shape index: {}]
  %s1 = inlined_call_operand.vmem [shape: f32[16,16], index: 1, kind: input, shape index: {}]
  %s2 = inlined_call_operand.vmem [shape: f32[1,16], index: 2, kind: input, shape index: {}]
  %s3 = inlined_call_operand.vmem [shape: f32[144,8], index: 3, kind: input, shape index: {}]
  %s4 = inlined_call_operand.vmem [shape: f32[1,8], index: 4, kind: input, shape index: {}]
  %s5 = inlined_call_operand.vmem [shape: f32[200,100], index: 5, kind: input, shape index: {}]
  %s6 = inlined_call_operand.vmem [shape: f32[1,100], index: 6, kind: input, shape index: {}]
  %s7 = inlined_call_operand.vmem [shape: f32[100,40], index: 7, kind: input, shape index: {}]
  %s8 = inlined_call_operand.vmem [shape: f32[1,40], index: 8, kind: input, shape index: {}]
  %s9 = inlined_call_operand.vmem [shape: f32[40,128], index: 9, kind: input, shape index: {}]
  %s10 = inlined_call_operand.vmem [shape: f32[1,128], index: 10, kind: input, shape index: {}]
  %s11 = inlined_call_operand.vmem [shape: f32[8,128], index: 11, kind: output, shape index: {}]
  %s12 = sld [smem:[#allocation0]]
  $region54: #{forward.1} parent=0
    _
  %s14 = ssub.s32 1, %s12
  %s15 = scalar_select 0, %s14, %s12
  // Predicated region
  $region2: #{forward.1} parent=0 // pred_check
    _
  $region3: #{forward.1} parent=0 // pred_check_branch
    %17 = sbr.rel (0) target = $region5
  $region4: #{forward.1} parent=0 // pred_region
    _
  $region5: #{forward.1} parent=0 // pred_fallthru
    _
  // Predicated region
  $region6: #{forward.1} parent=0 // pred_check
    _
  $region7: #{forward.1} parent=0 // pred_check_branch
    %19 = sbr.rel (0) target = $region9
  $region8: #{forward.1} parent=0 // pred_region
    _
  $region9: #{forward.1} parent=0 // pred_fallthru
    _
  // Predicated region
  $region10: #{forward.1} parent=0 // pred_check
    _
  $region11: #{forward.1} parent=0 // pred_check_branch
    %21 = sbr.rel (0) target = $region13
  $region12: #{forward.1} parent=0 // pred_region
    _
  $region13: #{forward.1} parent=0 // pred_fallthru
    _
  // Predicated region
  $region14: #{forward.1} parent=0 // pred_check
    _
  $region15: #{forward.1} parent=0 // pred_check_branch
    %23 = sbr.rel (0) target = $region17
  $region16: #{forward.1} parent=0 // pred_region
    _
  $region17: #{forward.1} parent=0 // pred_fallthru
    _
  // Predicated region
  $region18: #{forward.1} parent=0 // pred_check
    _
  $region19: #{forward.1} parent=0 // pred_check_branch
    %25 = sbr.rel (0) target = $region21
  $region20: #{forward.1} parent=0 // pred_region
    _
  $region21: #{forward.1} parent=0 // pred_fallthru
    _
  // Predicated region
  $region22: #{forward.1} parent=0 // pred_check
    _
  $region23: #{forward.1} parent=0 // pred_check_branch
    %27 = sbr.rel (0) target = $region25
  $region24: #{forward.1} parent=0 // pred_region
    _
  $region25: #{forward.1} parent=0 // pred_fallthru
    _
  // Predicated region
  $region26: #{forward.1} parent=0 // pred_check
    _
  $region27: #{forward.1} parent=0 // pred_check_branch
    %29 = sbr.rel (0) target = $region29
  $region28: #{forward.1} parent=0 // pred_region
    _
  $region29: #{forward.1} parent=0 // pred_fallthru
    _
  // Predicated region
  $region30: #{forward.1} parent=0 // pred_check
    _
  $region31: #{forward.1} parent=0 // pred_check_branch
    %31 = sbr.rel (0) target = $region33
  $region32: #{forward.1} parent=0 // pred_region
    _
  $region33: #{forward.1} parent=0 // pred_fallthru
    _
  // Predicated region
  $region34: #{forward.1} parent=0 // pred_check
    _
  $region35: #{forward.1} parent=0 // pred_check_branch
    %33 = sbr.rel (0) target = $region37
  $region36: #{forward.1} parent=0 // pred_region
    _
  $region37: #{forward.1} parent=0 // pred_fallthru
    _
  // Predicated region
  $region38: #{forward.1} parent=0 // pred_check
    _
  $region39: #{forward.1} parent=0 // pred_check_branch
    %35 = sbr.rel (0) target = $region41
  $region40: #{forward.1} parent=0 // pred_region
    _
  $region41: #{forward.1} parent=0 // pred_fallthru
    _
  // Predicated region
  $region42: #{forward.1} parent=0 // pred_check
    _
  $region43: #{forward.1} parent=0 // pred_check_branch
    %37 = sbr.rel (0) target = $region45
  $region44: #{forward.1} parent=0 // pred_region
    _
  $region45: #{forward.1} parent=0 // pred_fallthru
    _
  %v38 = vld [vmem:[%s0] sm:$0xff]
  %v39 = vld [vmem:[%s0 + $0x8] sm:$0xff]
  %v40 = vld [vmem:[%s0 + $0x10] sm:$0xff]
  %v41 = vld [vmem:[%s0 + $0x18] sm:$0xff]
  %v42 = vld [vmem:[%s0 + $0x20] sm:$0xff]
  %v43 = vld [vmem:[%s0 + $0x28] sm:$0xff]
  %v44 = vld [vmem:[%s0 + $0x30] sm:$0xff]
  %v45 = vld [vmem:[%s0 + $0x38] sm:$0xff]
  %v46 = vld [vmem:[%s0 + $0x40] sm:$0xff]
  %v47 = vld [vmem:[%s0 + $0x48] sm:$0xff]
  %v48 = vld [vmem:[%s0 + $0x50] sm:$0xff]
  %v49 = vld [vmem:[%s0 + $0x58] sm:$0xff]
  %v50 = vld [vmem:[%s0 + $0x60] sm:$0xff]
  %v51 = vld [vmem:[%s0 + $0x68] sm:$0xff]
  %v52 = vld [vmem:[%s0 + $0x70] sm:$0xff]
  %v53 = vld [vmem:[%s0 + $0x78] sm:$0xff]
  %v54 = vld [vmem:[%s0 + $0x80] sm:$0xff]
  %v55 = vld [vmem:[%s0 + $0x88] sm:$0xff]
  %v56 = vld [vmem:[%s0 + $0x90] sm:$0xff]
  %v57 = vld [vmem:[%s0 + $0x98] sm:$0xff]
  %v58 = vld [vmem:[%s0 + $0xa0] sm:$0xff]
  %v59 = vld [vmem:[%s0 + $0xa8] sm:$0xff]
  %v60 = vld [vmem:[%s0 + $0xb0] sm:$0xff]
  %v61 = vld [vmem:[%s0 + $0xb8] sm:$0xff]
  %v62 = vld [vmem:[%s0 + $0xc0] sm:$0xff]
  %v63 = vld [vmem:[%s0 + $0xc8] sm:$0xff]
  %v64 = vld [vmem:[%s0 + $0xd0] sm:$0xff]
  %v65 = vld [vmem:[%s0 + $0xd8] sm:$0xff]
  %v66 = vld [vmem:[%s0 + $0xe0] sm:$0xff]
  %v67 = vld [vmem:[%s0 + $0xe8] sm:$0xff]
  %v68 = vld [vmem:[%s0 + $0xf0] sm:$0xff]
  %v69 = vld [vmem:[%s0 + $0xf8] sm:$0xff]
  %v70 = vld [vmem:[%s0 + $0x100] sm:$0xff]
  %v71 = vld [vmem:[%s0 + $0x108] sm:$0xff]
  %v72 = vld [vmem:[%s0 + $0x110] sm:$0xff]
  %v73 = vld [vmem:[%s0 + $0x118] sm:$0xff]
  %v74 = vld [vmem:[%s0 + $0x120] sm:$0xff]
  %v75 = vld [vmem:[%s0 + $0x128] sm:$0xff]
  %v76 = vld [vmem:[%s0 + $0x130] sm:$0xff]
  %v77 = vld [vmem:[%s0 + $0x138] sm:$0xff]
  %v78 = vld [vmem:[%s0 + $0x140] sm:$0xff]
  %v79 = vld [vmem:[%s0 + $0x148] sm:$0xff]
  %v80 = vld [vmem:[%s0 + $0x150] sm:$0xff]
  %v81 = vld [vmem:[%s0 + $0x158] sm:$0xff]
  %v82 = vld [vmem:[%s0 + $0x160] sm:$0xff]
  %v83 = vld [vmem:[%s0 + $0x168] sm:$0xff]
  %v84 = vld [vmem:[%s0 + $0x170] sm:$0xff]
  %v85 = vld [vmem:[%s0 + $0x178] sm:$0xff]
  %v86 = vld [vmem:[%s0 + $0x180] sm:$0xff]
  %v87 = vld [vmem:[%s0 + $0x188] sm:$0xff]
  %v88 = vld [vmem:[%s0 + $0x190] sm:$0xff]
  %v89 = vld [vmem:[%s0 + $0x198] sm:$0xff]
  %v90 = vld [vmem:[%s0 + $0x1a0] sm:$0xff]
  %v91 = vld [vmem:[%s0 + $0x1a8] sm:$0xff]
  %v92 = vld [vmem:[%s0 + $0x1b0] sm:$0xff]
  %v93 = vld [vmem:[%s0 + $0x1b8] sm:$0xff]
  %v94 = vld [vmem:[%s0 + $0x1c0] sm:$0xff]
  %v95 = vld [vmem:[%s0 + $0x1c8] sm:$0xff]
  %v96 = vld [vmem:[%s0 + $0x1d0] sm:$0xff]
  %v97 = vld [vmem:[%s0 + $0x1d8] sm:$0xff]
  %v98 = vld [vmem:[%s0 + $0x1e0] sm:$0xff]
  %v99 = vld [vmem:[%s0 + $0x1e8] sm:$0xff]
  %v100 = vld [vmem:[%s0 + $0x1f0] sm:$0xff]
  %v101 = vld [vmem:[%s0 + $0x1f8] sm:$0xff]
  %v102 = vld [vmem:[%s0 + $0x200] sm:$0xff]
  %v103 = vld [vmem:[%s0 + $0x208] sm:$0xff]
  %v104 = vld [vmem:[%s0 + $0x210] sm:$0xff]
  %v105 = vld [vmem:[%s0 + $0x218] sm:$0xff]
  %v106 = vld [vmem:[%s0 + $0x220] sm:$0xff]
  %v107 = vld [vmem:[%s0 + $0x228] sm:$0xff]
  %v108 = vld [vmem:[%s0 + $0x230] sm:$0xff]
  %v109 = vld [vmem:[%s0 + $0x238] sm:$0xff]
  %v110 = vld [vmem:[%s0 + $0x240] sm:$0xff]
  %v111 = vld [vmem:[%s0 + $0x248] sm:$0xff]
  %v112 = vld [vmem:[%s0 + $0x250] sm:$0xff]
  %v113 = vld [vmem:[%s0 + $0x258] sm:$0xff]
  %v114 = vld [vmem:[%s0 + $0x260] sm:$0xff]
  %v115 = vld [vmem:[%s0 + $0x268] sm:$0xff]
  %v116 = vld [vmem:[%s0 + $0x270] sm:$0xff]
  %v117 = vld [vmem:[%s0 + $0x278] sm:$0xff]
  %v118 = vld [vmem:[%s0 + $0x280] sm:$0xff]
  %v119 = vld [vmem:[%s0 + $0x288] sm:$0xff]
  %v120 = vld [vmem:[%s0 + $0x290] sm:$0xff]
  %v121 = vld [vmem:[%s0 + $0x298] sm:$0xff]
  %v122 = vld [vmem:[%s0 + $0x2a0] sm:$0xff]
  %v123 = vld [vmem:[%s0 + $0x2a8] sm:$0xff]
  %v124 = vld [vmem:[%s0 + $0x2b0] sm:$0xff]
  %v125 = vld [vmem:[%s0 + $0x2b8] sm:$0xff]
  %v126 = vld [vmem:[%s0 + $0x2c0] sm:$0xff]
  %v127 = vld [vmem:[%s0 + $0x2c8] sm:$0xff]
  %v128 = vld [vmem:[%s0 + $0x2d0] sm:$0xff]
  %v129 = vld [vmem:[%s0 + $0x2d8] sm:$0xff]
  %v130 = vld [vmem:[%s0 + $0x2e0] sm:$0xff]
  %v131 = vld [vmem:[%s0 + $0x2e8] sm:$0xff]
  %v132 = vld [vmem:[%s0 + $0x2f0] sm:$0xff]
  %v133 = vld [vmem:[%s0 + $0x2f8] sm:$0xff]
  %v134 = vld [vmem:[%s0 + $0x300] sm:$0xff]
  %v135 = vld [vmem:[%s0 + $0x308] sm:$0xff]
  %v136 = vld [vmem:[%s0 + $0x310] sm:$0xff]
  %v137 = vld [vmem:[%s0 + $0x318] sm:$0xff]
  %v138 = vld [vmem:[%s1] sm:$0xff]
  %v139 = vld [vmem:[%s1 + $0x8] sm:$0xff]
  %vm140 = vcmask 130048
  %v142 = vsel %vm140, %v38, 0
  %v145 = vsel %vm140, %v39, 0
  %v148 = vsel %vm140, %v40, 0
  %v151 = vsel %vm140, %v41, 0
  %v154 = vsel %vm140, %v42, 0
  %v157 = vsel %vm140, %v43, 0
  %v160 = vsel %vm140, %v44, 0
  %v163 = vsel %vm140, %v45, 0
  %v166 = vsel %vm140, %v46, 0
  %v169 = vsel %vm140, %v47, 0
  %v172 = vsel %vm140, %v48, 0
  %v175 = vsel %vm140, %v49, 0
  %v178 = vsel %vm140, %v50, 0
  %v181 = vsel %vm140, %v51, 0
  %v184 = vsel %vm140, %v52, 0
  %v187 = vsel %vm140, %v53, 0
  %v190 = vsel %vm140, %v54, 0
  %v193 = vsel %vm140, %v55, 0
  %v196 = vsel %vm140, %v56, 0
  %v199 = vsel %vm140, %v57, 0
  %v202 = vsel %vm140, %v58, 0
  %v205 = vsel %vm140, %v59, 0
  %v208 = vsel %vm140, %v60, 0
  %v211 = vsel %vm140, %v61, 0
  %v214 = vsel %vm140, %v62, 0
  %v217 = vsel %vm140, %v63, 0
  %v220 = vsel %vm140, %v64, 0
  %v223 = vsel %vm140, %v65, 0
  %v226 = vsel %vm140, %v66, 0
  %v229 = vsel %vm140, %v67, 0
  %v232 = vsel %vm140, %v68, 0
  %v235 = vsel %vm140, %v69, 0
  %v238 = vsel %vm140, %v70, 0
  %v241 = vsel %vm140, %v71, 0
  %v244 = vsel %vm140, %v72, 0
  %v247 = vsel %vm140, %v73, 0
  %v250 = vsel %vm140, %v74, 0
  %v253 = vsel %vm140, %v75, 0
  %v256 = vsel %vm140, %v76, 0
  %v259 = vsel %vm140, %v77, 0
  %v262 = vsel %vm140, %v78, 0
  %v265 = vsel %vm140, %v79, 0
  %v268 = vsel %vm140, %v80, 0
  %v271 = vsel %vm140, %v81, 0
  %v274 = vsel %vm140, %v82, 0
  %v277 = vsel %vm140, %v83, 0
  %v280 = vsel %vm140, %v84, 0
  %v283 = vsel %vm140, %v85, 0
  %v286 = vsel %vm140, %v86, 0
  %v289 = vsel %vm140, %v87, 0
  %v292 = vsel %vm140, %v88, 0
  %v295 = vsel %vm140, %v89, 0
  %v298 = vsel %vm140, %v90, 0
  %v301 = vsel %vm140, %v91, 0
  %v304 = vsel %vm140, %v92, 0
  %v307 = vsel %vm140, %v93, 0
  %v310 = vsel %vm140, %v94, 0
  %v313 = vsel %vm140, %v95, 0
  %v316 = vsel %vm140, %v96, 0
  %v319 = vsel %vm140, %v97, 0
  %v322 = vsel %vm140, %v98, 0
  %v325 = vsel %vm140, %v99, 0
  %v328 = vsel %vm140, %v100, 0
  %v331 = vsel %vm140, %v101, 0
  %v334 = vsel %vm140, %v102, 0
  %v337 = vsel %vm140, %v103, 0
  %v340 = vsel %vm140, %v104, 0
  %v343 = vsel %vm140, %v105, 0
  %v346 = vsel %vm140, %v106, 0
  %v349 = vsel %vm140, %v107, 0
  %v352 = vsel %vm140, %v108, 0
  %v355 = vsel %vm140, %v109, 0
  %v358 = vsel %vm140, %v110, 0
  %v361 = vsel %vm140, %v111, 0
  %v364 = vsel %vm140, %v112, 0
  %v367 = vsel %vm140, %v113, 0
  %v370 = vsel %vm140, %v114, 0
  %v373 = vsel %vm140, %v115, 0
  %v376 = vsel %vm140, %v116, 0
  %v379 = vsel %vm140, %v117, 0
  %v382 = vsel %vm140, %v118, 0
  %v385 = vsel %vm140, %v119, 0
  %v388 = vsel %vm140, %v120, 0
  %v391 = vsel %vm140, %v121, 0
  %v394 = vsel %vm140, %v122, 0
  %v397 = vsel %vm140, %v123, 0
  %v400 = vsel %vm140, %v124, 0
  %v403 = vsel %vm140, %v125, 0
  %v406 = vsel %vm140, %v126, 0
  %v409 = vsel %vm140, %v127, 0
  %v412 = vsel %vm140, %v128, 0
  %v415 = vsel %vm140, %v129, 0
  %v418 = vsel %vm140, %v130, 0
  %v421 = vsel %vm140, %v131, 0
  %v424 = vsel %vm140, %v132, 0
  %v427 = vsel %vm140, %v133, 0
  %v430 = vsel %vm140, %v134, 0
  %v433 = vsel %vm140, %v135, 0
  %v436 = vsel %vm140, %v136, 0
  %v439 = vsel %vm140, %v137, 0
  %441 = vmatpush.msra.mxu0 0.0
  %442 = vmatpush.msra.mxu0 0.0
  %443 = vmatpush.msra.mxu0 0.0
  %444 = vmatpush.msra.mxu0 0.0
  %445 = vmatpush.msra.mxu0 0.0
  %446 = vmatpush.msra.mxu0 0.0
  %447 = vmatpush.msra.mxu0 0.0
  %448 = vmatpush.msra.mxu0 0.0
  %449 = vmatpush.msra.mxu0 0.0
  %450 = vmatpush.msra.mxu0 0.0
  %451 = vmatpush.msra.mxu0 0.0
  %452 = vmatpush.msra.mxu0 0.0
  %453 = vmatpush.msra.mxu0 0.0
  %454 = vmatpush.msra.mxu0 0.0
  %455 = vmatpush.msra.mxu0 %v139
  %456 = vmatpush.msra.mxu0 %v138
  %457 = vmatmul.f32.gmra.mxu0 %v142
  %v458 = vpop.f32.mrf.mxu0
  %v459 = vadd.f32 0.0, %v458
  %460 = vmatmul.f32.gmra.mxu0 %v145
  %v461 = vpop.f32.mrf.mxu0
  %v462 = vadd.f32 0.0, %v461
  %463 = vmatmul.f32.gmra.mxu0 %v148
  %v464 = vpop.f32.mrf.mxu0
  %v465 = vadd.f32 0.0, %v464
  %466 = vmatmul.f32.gmra.mxu0 %v151
  %v467 = vpop.f32.mrf.mxu0
  %v468 = vadd.f32 0.0, %v467
  %469 = vmatmul.f32.gmra.mxu0 %v154
  %v470 = vpop.f32.mrf.mxu0
  %v471 = vadd.f32 0.0, %v470
  %472 = vmatmul.f32.gmra.mxu0 %v157
  %v473 = vpop.f32.mrf.mxu0
  %v474 = vadd.f32 0.0, %v473
  %475 = vmatmul.f32.gmra.mxu0 %v160
  %v476 = vpop.f32.mrf.mxu0
  %v477 = vadd.f32 0.0, %v476
  %478 = vmatmul.f32.gmra.mxu0 %v163
  %v479 = vpop.f32.mrf.mxu0
  %v480 = vadd.f32 0.0, %v479
  %481 = vmatmul.f32.gmra.mxu0 %v166
  %v482 = vpop.f32.mrf.mxu0
  %v483 = vadd.f32 0.0, %v482
  %484 = vmatmul.f32.gmra.mxu0 %v169
  %v485 = vpop.f32.mrf.mxu0
  %v486 = vadd.f32 0.0, %v485
  %487 = vmatmul.f32.gmra.mxu0 %v172
  %v488 = vpop.f32.mrf.mxu0
  %v489 = vadd.f32 0.0, %v488
  %490 = vmatmul.f32.gmra.mxu0 %v175
  %v491 = vpop.f32.mrf.mxu0
  %v492 = vadd.f32 0.0, %v491
  %493 = vmatmul.f32.gmra.mxu0 %v178
  %v494 = vpop.f32.mrf.mxu0
  %v495 = vadd.f32 0.0, %v494
  %496 = vmatmul.f32.gmra.mxu0 %v181
  %v497 = vpop.f32.mrf.mxu0
  %v498 = vadd.f32 0.0, %v497
  %499 = vmatmul.f32.gmra.mxu0 %v184
  %v500 = vpop.f32.mrf.mxu0
  %v501 = vadd.f32 0.0, %v500
  %502 = vmatmul.f32.gmra.mxu0 %v187
  %v503 = vpop.f32.mrf.mxu0
  %v504 = vadd.f32 0.0, %v503
  %505 = vmatmul.f32.gmra.mxu0 %v190
  %v506 = vpop.f32.mrf.mxu0
  %v507 = vadd.f32 0.0, %v506
  %508 = vmatmul.f32.gmra.mxu0 %v193
  %v509 = vpop.f32.mrf.mxu0
  %v510 = vadd.f32 0.0, %v509
  %511 = vmatmul.f32.gmra.mxu0 %v196
  %v512 = vpop.f32.mrf.mxu0
  %v513 = vadd.f32 0.0, %v512
  %514 = vmatmul.f32.gmra.mxu0 %v199
  %v515 = vpop.f32.mrf.mxu0
  %v516 = vadd.f32 0.0, %v515
  %517 = vmatmul.f32.gmra.mxu0 %v202
  %v518 = vpop.f32.mrf.mxu0
  %v519 = vadd.f32 0.0, %v518
  %520 = vmatmul.f32.gmra.mxu0 %v205
  %v521 = vpop.f32.mrf.mxu0
  %v522 = vadd.f32 0.0, %v521
  %523 = vmatmul.f32.gmra.mxu0 %v208
  %v524 = vpop.f32.mrf.mxu0
  %v525 = vadd.f32 0.0, %v524
  %526 = vmatmul.f32.gmra.mxu0 %v211
  %v527 = vpop.f32.mrf.mxu0
  %v528 = vadd.f32 0.0, %v527
  %529 = vmatmul.f32.gmra.mxu0 %v214
  %v530 = vpop.f32.mrf.mxu0
  %v531 = vadd.f32 0.0, %v530
  %532 = vmatmul.f32.gmra.mxu0 %v217
  %v533 = vpop.f32.mrf.mxu0
  %v534 = vadd.f32 0.0, %v533
  %535 = vmatmul.f32.gmra.mxu0 %v220
  %v536 = vpop.f32.mrf.mxu0
  %v537 = vadd.f32 0.0, %v536
  %538 = vmatmul.f32.gmra.mxu0 %v223
  %v539 = vpop.f32.mrf.mxu0
  %v540 = vadd.f32 0.0, %v539
  %541 = vmatmul.f32.gmra.mxu0 %v226
  %v542 = vpop.f32.mrf.mxu0
  %v543 = vadd.f32 0.0, %v542
  %544 = vmatmul.f32.gmra.mxu0 %v229
  %v545 = vpop.f32.mrf.mxu0
  %v546 = vadd.f32 0.0, %v545
  %547 = vmatmul.f32.gmra.mxu0 %v232
  %v548 = vpop.f32.mrf.mxu0
  %v549 = vadd.f32 0.0, %v548
  %550 = vmatmul.f32.gmra.mxu0 %v235
  %v551 = vpop.f32.mrf.mxu0
  %v552 = vadd.f32 0.0, %v551
  %553 = vmatmul.f32.gmra.mxu0 %v238
  %v554 = vpop.f32.mrf.mxu0
  %v555 = vadd.f32 0.0, %v554
  %556 = vmatmul.f32.gmra.mxu0 %v241
  %v557 = vpop.f32.mrf.mxu0
  %v558 = vadd.f32 0.0, %v557
  %559 = vmatmul.f32.gmra.mxu0 %v244
  %v560 = vpop.f32.mrf.mxu0
  %v561 = vadd.f32 0.0, %v560
  %562 = vmatmul.f32.gmra.mxu0 %v247
  %v563 = vpop.f32.mrf.mxu0
  %v564 = vadd.f32 0.0, %v563
  %565 = vmatmul.f32.gmra.mxu0 %v250
  %v566 = vpop.f32.mrf.mxu0
  %v567 = vadd.f32 0.0, %v566
  %568 = vmatmul.f32.gmra.mxu0 %v253
  %v569 = vpop.f32.mrf.mxu0
  %v570 = vadd.f32 0.0, %v569
  %571 = vmatmul.f32.gmra.mxu0 %v256
  %v572 = vpop.f32.mrf.mxu0
  %v573 = vadd.f32 0.0, %v572
  %574 = vmatmul.f32.gmra.mxu0 %v259
  %v575 = vpop.f32.mrf.mxu0
  %v576 = vadd.f32 0.0, %v575
  %577 = vmatmul.f32.gmra.mxu0 %v262
  %v578 = vpop.f32.mrf.mxu0
  %v579 = vadd.f32 0.0, %v578
  %580 = vmatmul.f32.gmra.mxu0 %v265
  %v581 = vpop.f32.mrf.mxu0
  %v582 = vadd.f32 0.0, %v581
  %583 = vmatmul.f32.gmra.mxu0 %v268
  %v584 = vpop.f32.mrf.mxu0
  %v585 = vadd.f32 0.0, %v584
  %586 = vmatmul.f32.gmra.mxu0 %v271
  %v587 = vpop.f32.mrf.mxu0
  %v588 = vadd.f32 0.0, %v587
  %589 = vmatmul.f32.gmra.mxu0 %v274
  %v590 = vpop.f32.mrf.mxu0
  %v591 = vadd.f32 0.0, %v590
  %592 = vmatmul.f32.gmra.mxu0 %v277
  %v593 = vpop.f32.mrf.mxu0
  %v594 = vadd.f32 0.0, %v593
  %595 = vmatmul.f32.gmra.mxu0 %v280
  %v596 = vpop.f32.mrf.mxu0
  %v597 = vadd.f32 0.0, %v596
  %598 = vmatmul.f32.gmra.mxu0 %v283
  %v599 = vpop.f32.mrf.mxu0
  %v600 = vadd.f32 0.0, %v599
  %601 = vmatmul.f32.gmra.mxu0 %v286
  %v602 = vpop.f32.mrf.mxu0
  %v603 = vadd.f32 0.0, %v602
  %604 = vmatmul.f32.gmra.mxu0 %v289
  %v605 = vpop.f32.mrf.mxu0
  %v606 = vadd.f32 0.0, %v605
  %607 = vmatmul.f32.gmra.mxu0 %v292
  %v608 = vpop.f32.mrf.mxu0
  %v609 = vadd.f32 0.0, %v608
  %610 = vmatmul.f32.gmra.mxu0 %v295
  %v611 = vpop.f32.mrf.mxu0
  %v612 = vadd.f32 0.0, %v611
  %613 = vmatmul.f32.gmra.mxu0 %v298
  %v614 = vpop.f32.mrf.mxu0
  %v615 = vadd.f32 0.0, %v614
  %616 = vmatmul.f32.gmra.mxu0 %v301
  %v617 = vpop.f32.mrf.mxu0
  %v618 = vadd.f32 0.0, %v617
  %619 = vmatmul.f32.gmra.mxu0 %v304
  %v620 = vpop.f32.mrf.mxu0
  %v621 = vadd.f32 0.0, %v620
  %622 = vmatmul.f32.gmra.mxu0 %v307
  %v623 = vpop.f32.mrf.mxu0
  %v624 = vadd.f32 0.0, %v623
  %625 = vmatmul.f32.gmra.mxu0 %v310
  %v626 = vpop.f32.mrf.mxu0
  %v627 = vadd.f32 0.0, %v626
  %628 = vmatmul.f32.gmra.mxu0 %v313
  %v629 = vpop.f32.mrf.mxu0
  %v630 = vadd.f32 0.0, %v629
  %631 = vmatmul.f32.gmra.mxu0 %v316
  %v632 = vpop.f32.mrf.mxu0
  %v633 = vadd.f32 0.0, %v632
  %634 = vmatmul.f32.gmra.mxu0 %v319
  %v635 = vpop.f32.mrf.mxu0
  %v636 = vadd.f32 0.0, %v635
  %637 = vmatmul.f32.gmra.mxu0 %v322
  %v638 = vpop.f32.mrf.mxu0
  %v639 = vadd.f32 0.0, %v638
  %640 = vmatmul.f32.gmra.mxu0 %v325
  %v641 = vpop.f32.mrf.mxu0
  %v642 = vadd.f32 0.0, %v641
  %643 = vmatmul.f32.gmra.mxu0 %v328
  %v644 = vpop.f32.mrf.mxu0
  %v645 = vadd.f32 0.0, %v644
  %646 = vmatmul.f32.gmra.mxu0 %v331
  %v647 = vpop.f32.mrf.mxu0
  %v648 = vadd.f32 0.0, %v647
  %649 = vmatmul.f32.gmra.mxu0 %v334
  %v650 = vpop.f32.mrf.mxu0
  %v651 = vadd.f32 0.0, %v650
  %652 = vmatmul.f32.gmra.mxu0 %v337
  %v653 = vpop.f32.mrf.mxu0
  %v654 = vadd.f32 0.0, %v653
  %655 = vmatmul.f32.gmra.mxu0 %v340
  %v656 = vpop.f32.mrf.mxu0
  %v657 = vadd.f32 0.0, %v656
  %658 = vmatmul.f32.gmra.mxu0 %v343
  %v659 = vpop.f32.mrf.mxu0
  %v660 = vadd.f32 0.0, %v659
  %661 = vmatmul.f32.gmra.mxu0 %v346
  %v662 = vpop.f32.mrf.mxu0
  %v663 = vadd.f32 0.0, %v662
  %664 = vmatmul.f32.gmra.mxu0 %v349
  %v665 = vpop.f32.mrf.mxu0
  %v666 = vadd.f32 0.0, %v665
  %667 = vmatmul.f32.gmra.mxu0 %v352
  %v668 = vpop.f32.mrf.mxu0
  %v669 = vadd.f32 0.0, %v668
  %670 = vmatmul.f32.gmra.mxu0 %v355
  %v671 = vpop.f32.mrf.mxu0
  %v672 = vadd.f32 0.0, %v671
  %673 = vmatmul.f32.gmra.mxu0 %v358
  %v674 = vpop.f32.mrf.mxu0
  %v675 = vadd.f32 0.0, %v674
  %676 = vmatmul.f32.gmra.mxu0 %v361
  %v677 = vpop.f32.mrf.mxu0
  %v678 = vadd.f32 0.0, %v677
  %679 = vmatmul.f32.gmra.mxu0 %v364
  %v680 = vpop.f32.mrf.mxu0
  %v681 = vadd.f32 0.0, %v680
  %682 = vmatmul.f32.gmra.mxu0 %v367
  %v683 = vpop.f32.mrf.mxu0
  %v684 = vadd.f32 0.0, %v683
  %685 = vmatmul.f32.gmra.mxu0 %v370
  %v686 = vpop.f32.mrf.mxu0
  %v687 = vadd.f32 0.0, %v686
  %688 = vmatmul.f32.gmra.mxu0 %v373
  %v689 = vpop.f32.mrf.mxu0
  %v690 = vadd.f32 0.0, %v689
  %691 = vmatmul.f32.gmra.mxu0 %v376
  %v692 = vpop.f32.mrf.mxu0
  %v693 = vadd.f32 0.0, %v692
  %694 = vmatmul.f32.gmra.mxu0 %v379
  %v695 = vpop.f32.mrf.mxu0
  %v696 = vadd.f32 0.0, %v695
  %697 = vmatmul.f32.gmra.mxu0 %v382
  %v698 = vpop.f32.mrf.mxu0
  %v699 = vadd.f32 0.0, %v698
  %700 = vmatmul.f32.gmra.mxu0 %v385
  %v701 = vpop.f32.mrf.mxu0
  %v702 = vadd.f32 0.0, %v701
  %703 = vmatmul.f32.gmra.mxu0 %v388
  %v704 = vpop.f32.mrf.mxu0
  %v705 = vadd.f32 0.0, %v704
  %706 = vmatmul.f32.gmra.mxu0 %v391
  %v707 = vpop.f32.mrf.mxu0
  %v708 = vadd.f32 0.0, %v707
  %709 = vmatmul.f32.gmra.mxu0 %v394
  %v710 = vpop.f32.mrf.mxu0
  %v711 = vadd.f32 0.0, %v710
  %712 = vmatmul.f32.gmra.mxu0 %v397
  %v713 = vpop.f32.mrf.mxu0
  %v714 = vadd.f32 0.0, %v713
  %715 = vmatmul.f32.gmra.mxu0 %v400
  %v716 = vpop.f32.mrf.mxu0
  %v717 = vadd.f32 0.0, %v716
  %718 = vmatmul.f32.gmra.mxu0 %v403
  %v719 = vpop.f32.mrf.mxu0
  %v720 = vadd.f32 0.0, %v719
  %721 = vmatmul.f32.gmra.mxu0 %v406
  %v722 = vpop.f32.mrf.mxu0
  %v723 = vadd.f32 0.0, %v722
  %724 = vmatmul.f32.gmra.mxu0 %v409
  %v725 = vpop.f32.mrf.mxu0
  %v726 = vadd.f32 0.0, %v725
  %727 = vmatmul.f32.gmra.mxu0 %v412
  %v728 = vpop.f32.mrf.mxu0
  %v729 = vadd.f32 0.0, %v728
  %730 = vmatmul.f32.gmra.mxu0 %v415
  %v731 = vpop.f32.mrf.mxu0
  %v732 = vadd.f32 0.0, %v731
  %733 = vmatmul.f32.gmra.mxu0 %v418
  %v734 = vpop.f32.mrf.mxu0
  %v735 = vadd.f32 0.0, %v734
  %736 = vmatmul.f32.gmra.mxu0 %v421
  %v737 = vpop.f32.mrf.mxu0
  %v738 = vadd.f32 0.0, %v737
  %739 = vmatmul.f32.gmra.mxu0 %v424
  %v740 = vpop.f32.mrf.mxu0
  %v741 = vadd.f32 0.0, %v740
  %742 = vmatmul.f32.gmra.mxu0 %v427
  %v743 = vpop.f32.mrf.mxu0
  %v744 = vadd.f32 0.0, %v743
  %745 = vmatmul.f32.gmra.mxu0 %v430
  %v746 = vpop.f32.mrf.mxu0
  %v747 = vadd.f32 0.0, %v746
  %748 = vmatmul.f32.gmra.mxu0 %v433
  %v749 = vpop.f32.mrf.mxu0
  %v750 = vadd.f32 0.0, %v749
  %751 = vmatmul.f32.gmra.mxu0 %v436
  %v752 = vpop.f32.mrf.mxu0
  %v753 = vadd.f32 0.0, %v752
  %754 = vmatmul.f32.gmra.mxu0 %v439
  %v755 = vpop.f32.mrf.mxu0
  %v756 = vadd.f32 0.0, %v755
  %757 = vdwg.mxu0
  %v758 = vmax.f32 %v459, %v534
  %v759 = vmax.f32 %v462, %v537
  %v760 = vmax.f32 %v465, %v540
  %v761 = vmax.f32 %v468, %v543
  %v762 = vmax.f32 %v471, %v546
  %v763 = vmax.f32 %v474, %v549
  %v764 = vmax.f32 %v477, %v552
  %v765 = vmax.f32 %v480, %v555
  %v766 = vmax.f32 %v483, %v558
  %v767 = vmax.f32 %v486, %v561
  %v768 = vmax.f32 %v489, %v564
  %v769 = vmax.f32 %v492, %v567
  %v770 = vmax.f32 %v495, %v570
  %v771 = vmax.f32 %v498, %v573
  %v772 = vmax.f32 %v501, %v576
  %v773 = vmax.f32 %v504, %v579
  %v774 = vmax.f32 %v507, %v582
  %v775 = vmax.f32 %v510, %v585
  %v776 = vmax.f32 %v513, %v588
  %v777 = vmax.f32 %v516, %v591
  %v778 = vmax.f32 %v519, %v594
  %v779 = vmax.f32 %v522, %v597
  %v780 = vmax.f32 %v525, %v600
  %v781 = vmax.f32 %v528, %v603
  %v782 = vmax.f32 %v531, %v606
  %v783 = vmax.f32 %v609, %v684
  %v784 = vmax.f32 %v612, %v687
  %v785 = vmax.f32 %v615, %v690
  %v786 = vmax.f32 %v618, %v693
  %v787 = vmax.f32 %v621, %v696
  %v788 = vmax.f32 %v624, %v699
  %v789 = vmax.f32 %v627, %v702
  %v790 = vmax.f32 %v630, %v705
  %v791 = vmax.f32 %v633, %v708
  %v792 = vmax.f32 %v636, %v711
  %v793 = vmax.f32 %v639, %v714
  %v794 = vmax.f32 %v642, %v717
  %v795 = vmax.f32 %v645, %v720
  %v796 = vmax.f32 %v648, %v723
  %v797 = vmax.f32 %v651, %v726
  %v798 = vmax.f32 %v654, %v729
  %v799 = vmax.f32 %v657, %v732
  %v800 = vmax.f32 %v660, %v735
  %v801 = vmax.f32 %v663, %v738
  %v802 = vmax.f32 %v666, %v741
  %v803 = vmax.f32 %v669, %v744
  %v804 = vmax.f32 %v672, %v747
  %v805 = vmax.f32 %v675, %v750
  %v806 = vmax.f32 %v678, %v753
  %v807 = vmax.f32 %v681, %v756
  %v808 = vmax.f32 %v758, %v783
  %v809 = vmax.f32 %v759, %v784
  %v810 = vmax.f32 %v760, %v785
  %v811 = vmax.f32 %v761, %v786
  %v812 = vmax.f32 %v762, %v787
  %v813 = vmax.f32 %v763, %v788
  %v814 = vmax.f32 %v764, %v789
  %v815 = vmax.f32 %v765, %v790
  %v816 = vmax.f32 %v766, %v791
  %v817 = vmax.f32 %v767, %v792
  %v818 = vmax.f32 %v768, %v793
  %v819 = vmax.f32 %v769, %v794
  %v820 = vmax.f32 %v770, %v795
  %v821 = vmax.f32 %v771, %v796
  %v822 = vmax.f32 %v772, %v797
  %v823 = vmax.f32 %v773, %v798
  %v824 = vmax.f32 %v774, %v799
  %v825 = vmax.f32 %v775, %v800
  %v826 = vmax.f32 %v776, %v801
  %v827 = vmax.f32 %v777, %v802
  %v828 = vmax.f32 %v778, %v803
  %v829 = vmax.f32 %v779, %v804
  %v830 = vmax.f32 %v780, %v805
  %v831 = vmax.f32 %v781, %v806
  %v832 = vmax.f32 %v782, %v807
  %v833 = vld [vmem:[%s2] sm:$0x1]
  %v835 = vperm.slane %v833, 0
  %v837 = vadd.f32 %v808, %v835
  %v838 = vadd.f32 %v809, %v835
  %v839 = vadd.f32 %v810, %v835
  %v840 = vadd.f32 %v811, %v835
  %v841 = vadd.f32 %v812, %v835
  %v842 = vadd.f32 %v813, %v835
  %v843 = vadd.f32 %v814, %v835
  %v844 = vadd.f32 %v815, %v835
  %v845 = vadd.f32 %v816, %v835
  %v846 = vadd.f32 %v817, %v835
  %v847 = vadd.f32 %v818, %v835
  %v848 = vadd.f32 %v819, %v835
  %v849 = vadd.f32 %v820, %v835
  %v850 = vadd.f32 %v821, %v835
  %v851 = vadd.f32 %v822, %v835
  %v852 = vadd.f32 %v823, %v835
  %v853 = vadd.f32 %v824, %v835
  %v854 = vadd.f32 %v825, %v835
  %v855 = vadd.f32 %v826, %v835
  %v856 = vadd.f32 %v827, %v835
  %v857 = vadd.f32 %v828, %v835
  %v858 = vadd.f32 %v829, %v835
  %v859 = vadd.f32 %v830, %v835
  %v860 = vadd.f32 %v831, %v835
  %v861 = vadd.f32 %v832, %v835
  %v862 = vmax.f32 %v837, 0.0
  %v863 = vmax.f32 %v838, 0.0
  %v864 = vmax.f32 %v839, 0.0
  %v865 = vmax.f32 %v840, 0.0
  %v866 = vmax.f32 %v841, 0.0
  %v867 = vmax.f32 %v842, 0.0
  %v868 = vmax.f32 %v843, 0.0
  %v869 = vmax.f32 %v844, 0.0
  %v870 = vmax.f32 %v845, 0.0
  %v871 = vmax.f32 %v846, 0.0
  %v872 = vmax.f32 %v847, 0.0
  %v873 = vmax.f32 %v848, 0.0
  %v874 = vmax.f32 %v849, 0.0
  %v875 = vmax.f32 %v850, 0.0
  %v876 = vmax.f32 %v851, 0.0
  %v877 = vmax.f32 %v852, 0.0
  %v878 = vmax.f32 %v853, 0.0
  %v879 = vmax.f32 %v854, 0.0
  %v880 = vmax.f32 %v855, 0.0
  %v881 = vmax.f32 %v856, 0.0
  %v882 = vmax.f32 %v857, 0.0
  %v883 = vmax.f32 %v858, 0.0
  %v884 = vmax.f32 %v859, 0.0
  %v885 = vmax.f32 %v860, 0.0
  %v886 = vmax.f32 %v861, 0.0
  %887 = vst [vmem:[#allocation2] sm:$0xff] 0.0
  %888 = vst.msk [vmem:[#allocation2 + $0x8] sm:$0xff] %vm140, 0.0
  %889 = vst [vmem:[#allocation2 + $0x10] sm:$0xff] 0.0
  %890 = vst.msk [vmem:[#allocation2 + $0x18] sm:$0xff] %vm140, 0.0
  %891 = vst [vmem:[#allocation2 + $0x20] sm:$0xff] 0.0
  %892 = vst.msk [vmem:[#allocation2 + $0x28] sm:$0xff] %vm140, 0.0
  %893 = vst [vmem:[#allocation2 + $0x30] sm:$0xff] 0.0
  %894 = vst.msk [vmem:[#allocation2 + $0x38] sm:$0xff] %vm140, 0.0
  %895 = vst [vmem:[#allocation2 + $0x40] sm:$0xff] 0.0
  %896 = vst.msk [vmem:[#allocation2 + $0x48] sm:$0xff] %vm140, 0.0
  %897 = vst [vmem:[#allocation2 + $0x50] sm:$0xff] 0.0
  %898 = vst.msk [vmem:[#allocation2 + $0x58] sm:$0xff] %vm140, 0.0
  %899 = vst [vmem:[#allocation2 + $0x60] sm:$0xff] 0.0
  %900 = vst.msk [vmem:[#allocation2 + $0x68] sm:$0xff] %vm140, 0.0
  %901 = vst [vmem:[#allocation2 + $0x70] sm:$0xff] 0.0
  %902 = vst.msk [vmem:[#allocation2 + $0x78] sm:$0xff] %vm140, 0.0
  %903 = vst [vmem:[#allocation2 + $0x80] sm:$0xff] 0.0
  %904 = vst.msk [vmem:[#allocation2 + $0x88] sm:$0xff] %vm140, 0.0
  %905 = vst [vmem:[#allocation2 + $0x90] sm:$0xff] 0.0
  %906 = vst.msk [vmem:[#allocation2 + $0x98] sm:$0xff] %vm140, 0.0
  %907 = vst [vmem:[#allocation2 + $0xa0] sm:$0xff] 0.0
  %908 = vst.msk [vmem:[#allocation2 + $0xa8] sm:$0xff] %vm140, 0.0
  %909 = vst [vmem:[#allocation2 + $0xb0] sm:$0xff] 0.0
  %910 = vst.msk [vmem:[#allocation2 + $0xb8] sm:$0xff] %vm140, 0.0
  %911 = vst [vmem:[#allocation2 + $0xc0] sm:$0xff] 0.0
  %912 = vst.msk [vmem:[#allocation2 + $0xc8] sm:$0xff] %vm140, 0.0
  %913 = vst [vmem:[#allocation2 + $0xd0] sm:$0xff] 0.0
  %914 = vst.msk [vmem:[#allocation2 + $0xd8] sm:$0xff] %vm140, 0.0
  %915 = vst [vmem:[#allocation2 + $0xe0] sm:$0xff] 0.0
  %916 = vst.msk [vmem:[#allocation2 + $0xe8] sm:$0xff] %vm140, 0.0
  %917 = vst [vmem:[#allocation2 + $0xf0] sm:$0xff] 0.0
  %918 = vst.msk [vmem:[#allocation2 + $0xf8] sm:$0xff] %vm140, 0.0
  %919 = vst [vmem:[#allocation2 + $0x100] sm:$0xff] 0.0
  %920 = vst.msk [vmem:[#allocation2 + $0x108] sm:$0xff] %vm140, 0.0
  %921 = vst [vmem:[#allocation2 + $0x110] sm:$0xff] 0.0
  %922 = vst.msk [vmem:[#allocation2 + $0x118] sm:$0xff] %vm140, 0.0
  %923 = vst [vmem:[#allocation2 + $0x120] sm:$0xff] 0.0
  %924 = vst.msk [vmem:[#allocation2 + $0x128] sm:$0xff] %vm140, 0.0
  %925 = vst [vmem:[#allocation2 + $0x130] sm:$0xff] 0.0
  %926 = vst.msk [vmem:[#allocation2 + $0x138] sm:$0xff] %vm140, 0.0
  %927 = vst [vmem:[#allocation2 + $0x140] sm:$0xff] 0.0
  %928 = vst.msk [vmem:[#allocation2 + $0x148] sm:$0xff] %vm140, 0.0
  %929 = vst [vmem:[#allocation2 + $0x150] sm:$0xff] 0.0
  %930 = vst.msk [vmem:[#allocation2 + $0x158] sm:$0xff] %vm140, 0.0
  %931 = vst [vmem:[#allocation2 + $0x160] sm:$0xff] 0.0
  %932 = vst.msk [vmem:[#allocation2 + $0x168] sm:$0xff] %vm140, 0.0
  %933 = vst [vmem:[#allocation2 + $0x170] sm:$0xff] 0.0
  %934 = vst.msk [vmem:[#allocation2 + $0x178] sm:$0xff] %vm140, 0.0
  %935 = vst [vmem:[#allocation2 + $0x180] sm:$0xff] 0.0
  %936 = vst.msk [vmem:[#allocation2 + $0x188] sm:$0xff] %vm140, 0.0
  %937 = vst.msk [vmem:[#allocation2 + $0x60] sm:$0xff] %vm140, %v862
  %938 = vst.msk [vmem:[#allocation2 + $0x70] sm:$0xff] %vm140, %v863
  %939 = vst.msk [vmem:[#allocation2 + $0x80] sm:$0xff] %vm140, %v864
  %940 = vst.msk [vmem:[#allocation2 + $0x90] sm:$0xff] %vm140, %v865
  %941 = vst.msk [vmem:[#allocation2 + $0xb0] sm:$0xff] %vm140, %v867
  %942 = vst.msk [vmem:[#allocation2 + $0xc0] sm:$0xff] %vm140, %v868
  %943 = vst.msk [vmem:[#allocation2 + $0xd0] sm:$0xff] %vm140, %v869
  %944 = vst.msk [vmem:[#allocation2 + $0xe0] sm:$0xff] %vm140, %v870
  %945 = vst.msk [vmem:[#allocation2 + $0x100] sm:$0xff] %vm140, %v872
  %946 = vst.msk [vmem:[#allocation2 + $0x110] sm:$0xff] %vm140, %v873
  %947 = vst.msk [vmem:[#allocation2 + $0x120] sm:$0xff] %vm140, %v874
  %948 = vst.msk [vmem:[#allocation2 + $0x130] sm:$0xff] %vm140, %v875
  %949 = vst.msk [vmem:[#allocation2 + $0x150] sm:$0xff] %vm140, %v877
  %950 = vst.msk [vmem:[#allocation2 + $0x160] sm:$0xff] %vm140, %v878
  %951 = vst.msk [vmem:[#allocation2 + $0x170] sm:$0xff] %vm140, %v879
  %952 = vst.msk [vmem:[#allocation2 + $0x180] sm:$0xff] %vm140, %v880
  %958 = vrot.lane.b32.xlu0 %v862, 16
  %v959 = vpop.permute.xlu0 %958
  %960 = vrot.lane.b32.xlu0 %v863, 16
  %v961 = vpop.permute.xlu0 %960
  %962 = vrot.lane.b32.xlu0 %v864, 16
  %v963 = vpop.permute.xlu0 %962
  %964 = vrot.lane.b32.xlu0 %v865, 16
  %v965 = vpop.permute.xlu0 %964
  %966 = vrot.lane.b32.xlu0 %v866, 16
  %v967 = vpop.permute.xlu0 %966
  %vm973 = vcmask 261248
  %974 = vst.msk [vmem:[#allocation2 + $0x50] sm:$0xff] %vm973, %v959
  %975 = vst.msk [vmem:[#allocation2 + $0x60] sm:$0xff] %vm973, %v961
  %976 = vst.msk [vmem:[#allocation2 + $0x70] sm:$0xff] %vm973, %v963
  %977 = vst.msk [vmem:[#allocation2 + $0x80] sm:$0xff] %vm973, %v965
  %978 = vst.msk [vmem:[#allocation2 + $0x90] sm:$0xff] %vm973, %v967
  %984 = vrot.lane.b32.xlu0 %v867, 16
  %v985 = vpop.permute.xlu0 %984
  %986 = vrot.lane.b32.xlu0 %v868, 16
  %v987 = vpop.permute.xlu0 %986
  %988 = vrot.lane.b32.xlu0 %v869, 16
  %v989 = vpop.permute.xlu0 %988
  %990 = vrot.lane.b32.xlu0 %v870, 16
  %v991 = vpop.permute.xlu0 %990
  %992 = vrot.lane.b32.xlu0 %v871, 16
  %v993 = vpop.permute.xlu0 %992
  %999 = vst.msk [vmem:[#allocation2 + $0xa0] sm:$0xff] %vm973, %v985
  %1000 = vst.msk [vmem:[#allocation2 + $0xb0] sm:$0xff] %vm973, %v987
  %1001 = vst.msk [vmem:[#allocation2 + $0xc0] sm:$0xff] %vm973, %v989
  %1002 = vst.msk [vmem:[#allocation2 + $0xd0] sm:$0xff] %vm973, %v991
  %1003 = vst.msk [vmem:[#allocation2 + $0xe0] sm:$0xff] %vm973, %v993
  %1009 = vrot.lane.b32.xlu0 %v872, 16
  %v1010 = vpop.permute.xlu0 %1009
  %1011 = vrot.lane.b32.xlu0 %v873, 16
  %v1012 = vpop.permute.xlu0 %1011
  %1013 = vrot.lane.b32.xlu0 %v874, 16
  %v1014 = vpop.permute.xlu0 %1013
  %1015 = vrot.lane.b32.xlu0 %v875, 16
  %v1016 = vpop.permute.xlu0 %1015
  %1017 = vrot.lane.b32.xlu0 %v876, 16
  %v1018 = vpop.permute.xlu0 %1017
  %1024 = vst.msk [vmem:[#allocation2 + $0xf0] sm:$0xff] %vm973, %v1010
  %1025 = vst.msk [vmem:[#allocation2 + $0x100] sm:$0xff] %vm973, %v1012
  %1026 = vst.msk [vmem:[#allocation2 + $0x110] sm:$0xff] %vm973, %v1014
  %1027 = vst.msk [vmem:[#allocation2 + $0x120] sm:$0xff] %vm973, %v1016
  %1028 = vst.msk [vmem:[#allocation2 + $0x130] sm:$0xff] %vm973, %v1018
  %1034 = vrot.lane.b32.xlu0 %v877, 16
  %v1035 = vpop.permute.xlu0 %1034
  %1036 = vrot.lane.b32.xlu0 %v878, 16
  %v1037 = vpop.permute.xlu0 %1036
  %1038 = vrot.lane.b32.xlu0 %v879, 16
  %v1039 = vpop.permute.xlu0 %1038
  %1040 = vrot.lane.b32.xlu0 %v880, 16
  %v1041 = vpop.permute.xlu0 %1040
  %1042 = vrot.lane.b32.xlu0 %v881, 16
  %v1043 = vpop.permute.xlu0 %1042
  %1049 = vst.msk [vmem:[#allocation2 + $0x140] sm:$0xff] %vm973, %v1035
  %1050 = vst.msk [vmem:[#allocation2 + $0x150] sm:$0xff] %vm973, %v1037
  %1051 = vst.msk [vmem:[#allocation2 + $0x160] sm:$0xff] %vm973, %v1039
  %1052 = vst.msk [vmem:[#allocation2 + $0x170] sm:$0xff] %vm973, %v1041
  %1053 = vst.msk [vmem:[#allocation2 + $0x180] sm:$0xff] %vm973, %v1043
  %1054 = vrot.lane.b32.xlu0 %v863, 32
  %v1055 = vpop.permute.xlu0 %1054
  %1056 = vrot.lane.b32.xlu0 %v864, 32
  %v1057 = vpop.permute.xlu0 %1056
  %1058 = vrot.lane.b32.xlu0 %v865, 32
  %v1059 = vpop.permute.xlu0 %1058
  %1060 = vrot.lane.b32.xlu0 %v866, 32
  %v1061 = vpop.permute.xlu0 %1060
  %vm1066 = vcmask 392448
  %1067 = vst.msk [vmem:[#allocation2 + $0x50] sm:$0xff] %vm1066, %v1055
  %1068 = vst.msk [vmem:[#allocation2 + $0x60] sm:$0xff] %vm1066, %v1057
  %1069 = vst.msk [vmem:[#allocation2 + $0x70] sm:$0xff] %vm1066, %v1059
  %1070 = vst.msk [vmem:[#allocation2 + $0x80] sm:$0xff] %vm1066, %v1061
  %1071 = vrot.lane.b32.xlu0 %v868, 32
  %v1072 = vpop.permute.xlu0 %1071
  %1073 = vrot.lane.b32.xlu0 %v869, 32
  %v1074 = vpop.permute.xlu0 %1073
  %1075 = vrot.lane.b32.xlu0 %v870, 32
  %v1076 = vpop.permute.xlu0 %1075
  %1077 = vrot.lane.b32.xlu0 %v871, 32
  %v1078 = vpop.permute.xlu0 %1077
  %1083 = vst.msk [vmem:[#allocation2 + $0xa0] sm:$0xff] %vm1066, %v1072
  %1084 = vst.msk [vmem:[#allocation2 + $0xb0] sm:$0xff] %vm1066, %v1074
  %1085 = vst.msk [vmem:[#allocation2 + $0xc0] sm:$0xff] %vm1066, %v1076
  %1086 = vst.msk [vmem:[#allocation2 + $0xd0] sm:$0xff] %vm1066, %v1078
  %1087 = vrot.lane.b32.xlu0 %v873, 32
  %v1088 = vpop.permute.xlu0 %1087
  %1089 = vrot.lane.b32.xlu0 %v874, 32
  %v1090 = vpop.permute.xlu0 %1089
  %1091 = vrot.lane.b32.xlu0 %v875, 32
  %v1092 = vpop.permute.xlu0 %1091
  %1093 = vrot.lane.b32.xlu0 %v876, 32
  %v1094 = vpop.permute.xlu0 %1093
  %1099 = vst.msk [vmem:[#allocation2 + $0xf0] sm:$0xff] %vm1066, %v1088
  %1100 = vst.msk [vmem:[#allocation2 + $0x100] sm:$0xff] %vm1066, %v1090
  %1101 = vst.msk [vmem:[#allocation2 + $0x110] sm:$0xff] %vm1066, %v1092
  %1102 = vst.msk [vmem:[#allocation2 + $0x120] sm:$0xff] %vm1066, %v1094
  %1103 = vrot.lane.b32.xlu0 %v878, 32
  %v1104 = vpop.permute.xlu0 %1103
  %1105 = vrot.lane.b32.xlu0 %v879, 32
  %v1106 = vpop.permute.xlu0 %1105
  %1107 = vrot.lane.b32.xlu0 %v880, 32
  %v1108 = vpop.permute.xlu0 %1107
  %1109 = vrot.lane.b32.xlu0 %v881, 32
  %v1110 = vpop.permute.xlu0 %1109
  %1115 = vst.msk [vmem:[#allocation2 + $0x140] sm:$0xff] %vm1066, %v1104
  %1116 = vst.msk [vmem:[#allocation2 + $0x150] sm:$0xff] %vm1066, %v1106
  %1117 = vst.msk [vmem:[#allocation2 + $0x160] sm:$0xff] %vm1066, %v1108
  %1118 = vst.msk [vmem:[#allocation2 + $0x170] sm:$0xff] %vm1066, %v1110
  %1119 = vrot.lane.b32.xlu0 %v862, 48
  %v1120 = vpop.permute.xlu0 %1119
  %1121 = vrot.lane.b32.xlu0 %v863, 48
  %v1122 = vpop.permute.xlu0 %1121
  %1123 = vrot.lane.b32.xlu0 %v864, 48
  %v1124 = vpop.permute.xlu0 %1123
  %1125 = vrot.lane.b32.xlu0 %v865, 48
  %v1126 = vpop.permute.xlu0 %1125
  %vm1131 = vcmask 523648
  %1132 = vst.msk [vmem:[#allocation2 + $0x10] sm:$0xff] %vm1131, %v1120
  %1133 = vst.msk [vmem:[#allocation2 + $0x20] sm:$0xff] %vm1131, %v1122
  %1134 = vst.msk [vmem:[#allocation2 + $0x30] sm:$0xff] %vm1131, %v1124
  %1135 = vst.msk [vmem:[#allocation2 + $0x40] sm:$0xff] %vm1131, %v1126
  %1136 = vrot.lane.b32.xlu0 %v867, 48
  %v1137 = vpop.permute.xlu0 %1136
  %1138 = vrot.lane.b32.xlu0 %v868, 48
  %v1139 = vpop.permute.xlu0 %1138
  %1140 = vrot.lane.b32.xlu0 %v869, 48
  %v1141 = vpop.permute.xlu0 %1140
  %1142 = vrot.lane.b32.xlu0 %v870, 48
  %v1143 = vpop.permute.xlu0 %1142
  %1148 = vst.msk [vmem:[#allocation2 + $0x60] sm:$0xff] %vm1131, %v1137
  %1149 = vst.msk [vmem:[#allocation2 + $0x70] sm:$0xff] %vm1131, %v1139
  %1150 = vst.msk [vmem:[#allocation2 + $0x80] sm:$0xff] %vm1131, %v1141
  %1151 = vst.msk [vmem:[#allocation2 + $0x90] sm:$0xff] %vm1131, %v1143
  %1152 = vrot.lane.b32.xlu0 %v872, 48
  %v1153 = vpop.permute.xlu0 %1152
  %1154 = vrot.lane.b32.xlu0 %v873, 48
  %v1155 = vpop.permute.xlu0 %1154
  %1156 = vrot.lane.b32.xlu0 %v874, 48
  %v1157 = vpop.permute.xlu0 %1156
  %1158 = vrot.lane.b32.xlu0 %v875, 48
  %v1159 = vpop.permute.xlu0 %1158
  %1164 = vst.msk [vmem:[#allocation2 + $0xb0] sm:$0xff] %vm1131, %v1153
  %1165 = vst.msk [vmem:[#allocation2 + $0xc0] sm:$0xff] %vm1131, %v1155
  %1166 = vst.msk [vmem:[#allocation2 + $0xd0] sm:$0xff] %vm1131, %v1157
  %1167 = vst.msk [vmem:[#allocation2 + $0xe0] sm:$0xff] %vm1131, %v1159
  %1168 = vrot.lane.b32.xlu0 %v877, 48
  %v1169 = vpop.permute.xlu0 %1168
  %1170 = vrot.lane.b32.xlu0 %v878, 48
  %v1171 = vpop.permute.xlu0 %1170
  %1172 = vrot.lane.b32.xlu0 %v879, 48
  %v1173 = vpop.permute.xlu0 %1172
  %1174 = vrot.lane.b32.xlu0 %v880, 48
  %v1175 = vpop.permute.xlu0 %1174
  %1180 = vst.msk [vmem:[#allocation2 + $0x100] sm:$0xff] %vm1131, %v1169
  %1181 = vst.msk [vmem:[#allocation2 + $0x110] sm:$0xff] %vm1131, %v1171
  %1182 = vst.msk [vmem:[#allocation2 + $0x120] sm:$0xff] %vm1131, %v1173
  %1183 = vst.msk [vmem:[#allocation2 + $0x130] sm:$0xff] %vm1131, %v1175
  %1188 = vrot.lane.b32.xlu0 %v882, 48
  %v1189 = vpop.permute.xlu0 %1188
  %1190 = vrot.lane.b32.xlu0 %v883, 48
  %v1191 = vpop.permute.xlu0 %1190
  %1192 = vrot.lane.b32.xlu0 %v884, 48
  %v1193 = vpop.permute.xlu0 %1192
  %1194 = vrot.lane.b32.xlu0 %v885, 48
  %v1195 = vpop.permute.xlu0 %1194
  %1200 = vst.msk [vmem:[#allocation2 + $0x150] sm:$0xff] %vm1131, %v1189
  %1201 = vst.msk [vmem:[#allocation2 + $0x160] sm:$0xff] %vm1131, %v1191
  %1202 = vst.msk [vmem:[#allocation2 + $0x170] sm:$0xff] %vm1131, %v1193
  %1203 = vst.msk [vmem:[#allocation2 + $0x180] sm:$0xff] %vm1131, %v1195
  %1204 = vrot.lane.b32.xlu0 %v862, 64
  %v1205 = vpop.permute.xlu0 %1204
  %1206 = vrot.lane.b32.xlu0 %v863, 64
  %v1207 = vpop.permute.xlu0 %1206
  %1208 = vrot.lane.b32.xlu0 %v864, 64
  %v1209 = vpop.permute.xlu0 %1208
  %1210 = vrot.lane.b32.xlu0 %v865, 64
  %v1211 = vpop.permute.xlu0 %1210
  %1212 = vrot.lane.b32.xlu0 %v866, 64
  %v1213 = vpop.permute.xlu0 %1212
  %vm1219 = vcmask 654848
  %1220 = vst.msk [vmem:[#allocation2] sm:$0xff] %vm1219, %v1205
  %1221 = vst.msk [vmem:[#allocation2 + $0x10] sm:$0xff] %vm1219, %v1207
  %1222 = vst.msk [vmem:[#allocation2 + $0x20] sm:$0xff] %vm1219, %v1209
  %1223 = vst.msk [vmem:[#allocation2 + $0x30] sm:$0xff] %vm1219, %v1211
  %1224 = vst.msk [vmem:[#allocation2 + $0x40] sm:$0xff] %vm1219, %v1213
  %1225 = vrot.lane.b32.xlu0 %v867, 64
  %v1226 = vpop.permute.xlu0 %1225
  %1227 = vrot.lane.b32.xlu0 %v868, 64
  %v1228 = vpop.permute.xlu0 %1227
  %1229 = vrot.lane.b32.xlu0 %v869, 64
  %v1230 = vpop.permute.xlu0 %1229
  %1231 = vrot.lane.b32.xlu0 %v870, 64
  %v1232 = vpop.permute.xlu0 %1231
  %1233 = vrot.lane.b32.xlu0 %v871, 64
  %v1234 = vpop.permute.xlu0 %1233
  %1240 = vst.msk [vmem:[#allocation2 + $0x50] sm:$0xff] %vm1219, %v1226
  %1241 = vst.msk [vmem:[#allocation2 + $0x60] sm:$0xff] %vm1219, %v1228
  %1242 = vst.msk [vmem:[#allocation2 + $0x70] sm:$0xff] %vm1219, %v1230
  %1243 = vst.msk [vmem:[#allocation2 + $0x80] sm:$0xff] %vm1219, %v1232
  %1244 = vst.msk [vmem:[#allocation2 + $0x90] sm:$0xff] %vm1219, %v1234
  %1245 = vrot.lane.b32.xlu0 %v872, 64
  %v1246 = vpop.permute.xlu0 %1245
  %1247 = vrot.lane.b32.xlu0 %v873, 64
  %v1248 = vpop.permute.xlu0 %1247
  %1249 = vrot.lane.b32.xlu0 %v874, 64
  %v1250 = vpop.permute.xlu0 %1249
  %1251 = vrot.lane.b32.xlu0 %v875, 64
  %v1252 = vpop.permute.xlu0 %1251
  %1253 = vrot.lane.b32.xlu0 %v876, 64
  %v1254 = vpop.permute.xlu0 %1253
  %1260 = vst.msk [vmem:[#allocation2 + $0xa0] sm:$0xff] %vm1219, %v1246
  %1261 = vst.msk [vmem:[#allocation2 + $0xb0] sm:$0xff] %vm1219, %v1248
  %1262 = vst.msk [vmem:[#allocation2 + $0xc0] sm:$0xff] %vm1219, %v1250
  %1263 = vst.msk [vmem:[#allocation2 + $0xd0] sm:$0xff] %vm1219, %v1252
  %1264 = vst.msk [vmem:[#allocation2 + $0xe0] sm:$0xff] %vm1219, %v1254
  %1265 = vrot.lane.b32.xlu0 %v877, 64
  %v1266 = vpop.permute.xlu0 %1265
  %1267 = vrot.lane.b32.xlu0 %v878, 64
  %v1268 = vpop.permute.xlu0 %1267
  %1269 = vrot.lane.b32.xlu0 %v879, 64
  %v1270 = vpop.permute.xlu0 %1269
  %1271 = vrot.lane.b32.xlu0 %v880, 64
  %v1272 = vpop.permute.xlu0 %1271
  %1273 = vrot.lane.b32.xlu0 %v881, 64
  %v1274 = vpop.permute.xlu0 %1273
  %1280 = vst.msk [vmem:[#allocation2 + $0xf0] sm:$0xff] %vm1219, %v1266
  %1281 = vst.msk [vmem:[#allocation2 + $0x100] sm:$0xff] %vm1219, %v1268
  %1282 = vst.msk [vmem:[#allocation2 + $0x110] sm:$0xff] %vm1219, %v1270
  %1283 = vst.msk [vmem:[#allocation2 + $0x120] sm:$0xff] %vm1219, %v1272
  %1284 = vst.msk [vmem:[#allocation2 + $0x130] sm:$0xff] %vm1219, %v1274
  %1286 = vrot.lane.b32.xlu0 %v882, 64
  %v1287 = vpop.permute.xlu0 %1286
  %1288 = vrot.lane.b32.xlu0 %v883, 64
  %v1289 = vpop.permute.xlu0 %1288
  %1290 = vrot.lane.b32.xlu0 %v884, 64
  %v1291 = vpop.permute.xlu0 %1290
  %1292 = vrot.lane.b32.xlu0 %v885, 64
  %v1293 = vpop.permute.xlu0 %1292
  %1294 = vrot.lane.b32.xlu0 %v886, 64
  %v1295 = vpop.permute.xlu0 %1294
  %1301 = vst.msk [vmem:[#allocation2 + $0x140] sm:$0xff] %vm1219, %v1287
  %1302 = vst.msk [vmem:[#allocation2 + $0x150] sm:$0xff] %vm1219, %v1289
  %1303 = vst.msk [vmem:[#allocation2 + $0x160] sm:$0xff] %vm1219, %v1291
  %1304 = vst.msk [vmem:[#allocation2 + $0x170] sm:$0xff] %vm1219, %v1293
  %1305 = vst.msk [vmem:[#allocation2 + $0x180] sm:$0xff] %vm1219, %v1295
  %1306 = vrot.lane.b32.xlu0 %v863, 80
  %v1307 = vpop.permute.xlu0 %1306
  %1308 = vrot.lane.b32.xlu0 %v864, 80
  %v1309 = vpop.permute.xlu0 %1308
  %1310 = vrot.lane.b32.xlu0 %v865, 80
  %v1311 = vpop.permute.xlu0 %1310
  %1312 = vrot.lane.b32.xlu0 %v866, 80
  %v1313 = vpop.permute.xlu0 %1312
  %vm1318 = vcmask 786048
  %1319 = vst.msk [vmem:[#allocation2] sm:$0xff] %vm1318, %v1307
  %1320 = vst.msk [vmem:[#allocation2 + $0x10] sm:$0xff] %vm1318, %v1309
  %1321 = vst.msk [vmem:[#allocation2 + $0x20] sm:$0xff] %vm1318, %v1311
  %1322 = vst.msk [vmem:[#allocation2 + $0x30] sm:$0xff] %vm1318, %v1313
  %1323 = vrot.lane.b32.xlu0 %v868, 80
  %v1324 = vpop.permute.xlu0 %1323
  %1325 = vrot.lane.b32.xlu0 %v869, 80
  %v1326 = vpop.permute.xlu0 %1325
  %1327 = vrot.lane.b32.xlu0 %v870, 80
  %v1328 = vpop.permute.xlu0 %1327
  %1329 = vrot.lane.b32.xlu0 %v871, 80
  %v1330 = vpop.permute.xlu0 %1329
  %1335 = vst.msk [vmem:[#allocation2 + $0x50] sm:$0xff] %vm1318, %v1324
  %1336 = vst.msk [vmem:[#allocation2 + $0x60] sm:$0xff] %vm1318, %v1326
  %1337 = vst.msk [vmem:[#allocation2 + $0x70] sm:$0xff] %vm1318, %v1328
  %1338 = vst.msk [vmem:[#allocation2 + $0x80] sm:$0xff] %vm1318, %v1330
  %1339 = vrot.lane.b32.xlu0 %v873, 80
  %v1340 = vpop.permute.xlu0 %1339
  %1341 = vrot.lane.b32.xlu0 %v874, 80
  %v1342 = vpop.permute.xlu0 %1341
  %1343 = vrot.lane.b32.xlu0 %v875, 80
  %v1344 = vpop.permute.xlu0 %1343
  %1345 = vrot.lane.b32.xlu0 %v876, 80
  %v1346 = vpop.permute.xlu0 %1345
  %1351 = vst.msk [vmem:[#allocation2 + $0xa0] sm:$0xff] %vm1318, %v1340
  %1352 = vst.msk [vmem:[#allocation2 + $0xb0] sm:$0xff] %vm1318, %v1342
  %1353 = vst.msk [vmem:[#allocation2 + $0xc0] sm:$0xff] %vm1318, %v1344
  %1354 = vst.msk [vmem:[#allocation2 + $0xd0] sm:$0xff] %vm1318, %v1346
  %1355 = vrot.lane.b32.xlu0 %v878, 80
  %v1356 = vpop.permute.xlu0 %1355
  %1357 = vrot.lane.b32.xlu0 %v879, 80
  %v1358 = vpop.permute.xlu0 %1357
  %1359 = vrot.lane.b32.xlu0 %v880, 80
  %v1360 = vpop.permute.xlu0 %1359
  %1361 = vrot.lane.b32.xlu0 %v881, 80
  %v1362 = vpop.permute.xlu0 %1361
  %1367 = vst.msk [vmem:[#allocation2 + $0xf0] sm:$0xff] %vm1318, %v1356
  %1368 = vst.msk [vmem:[#allocation2 + $0x100] sm:$0xff] %vm1318, %v1358
  %1369 = vst.msk [vmem:[#allocation2 + $0x110] sm:$0xff] %vm1318, %v1360
  %1370 = vst.msk [vmem:[#allocation2 + $0x120] sm:$0xff] %vm1318, %v1362
  %1371 = vrot.lane.b32.xlu0 %v883, 80
  %v1372 = vpop.permute.xlu0 %1371
  %1373 = vrot.lane.b32.xlu0 %v884, 80
  %v1374 = vpop.permute.xlu0 %1373
  %1375 = vrot.lane.b32.xlu0 %v885, 80
  %v1376 = vpop.permute.xlu0 %1375
  %1377 = vrot.lane.b32.xlu0 %v886, 80
  %v1378 = vpop.permute.xlu0 %1377
  %1383 = vst.msk [vmem:[#allocation2 + $0x140] sm:$0xff] %vm1318, %v1372
  %1384 = vst.msk [vmem:[#allocation2 + $0x150] sm:$0xff] %vm1318, %v1374
  %1385 = vst.msk [vmem:[#allocation2 + $0x160] sm:$0xff] %vm1318, %v1376
  %1386 = vst.msk [vmem:[#allocation2 + $0x170] sm:$0xff] %vm1318, %v1378
  %1387 = vrot.lane.b32.xlu0 %v867, 96
  %v1388 = vpop.permute.xlu0 %1387
  %1389 = vrot.lane.b32.xlu0 %v868, 96
  %v1390 = vpop.permute.xlu0 %1389
  %1391 = vrot.lane.b32.xlu0 %v869, 96
  %v1392 = vpop.permute.xlu0 %1391
  %1393 = vrot.lane.b32.xlu0 %v870, 96
  %v1394 = vpop.permute.xlu0 %1393
  %vm1399 = vcmask 917248
  %1400 = vst.msk [vmem:[#allocation2 + $0x10] sm:$0xff] %vm1399, %v1388
  %1401 = vst.msk [vmem:[#allocation2 + $0x20] sm:$0xff] %vm1399, %v1390
  %1402 = vst.msk [vmem:[#allocation2 + $0x30] sm:$0xff] %vm1399, %v1392
  %1403 = vst.msk [vmem:[#allocation2 + $0x40] sm:$0xff] %vm1399, %v1394
  %1404 = vrot.lane.b32.xlu0 %v872, 96
  %v1405 = vpop.permute.xlu0 %1404
  %1406 = vrot.lane.b32.xlu0 %v873, 96
  %v1407 = vpop.permute.xlu0 %1406
  %1408 = vrot.lane.b32.xlu0 %v874, 96
  %v1409 = vpop.permute.xlu0 %1408
  %1410 = vrot.lane.b32.xlu0 %v875, 96
  %v1411 = vpop.permute.xlu0 %1410
  %1416 = vst.msk [vmem:[#allocation2 + $0x60] sm:$0xff] %vm1399, %v1405
  %1417 = vst.msk [vmem:[#allocation2 + $0x70] sm:$0xff] %vm1399, %v1407
  %1418 = vst.msk [vmem:[#allocation2 + $0x80] sm:$0xff] %vm1399, %v1409
  %1419 = vst.msk [vmem:[#allocation2 + $0x90] sm:$0xff] %vm1399, %v1411
  %1420 = vrot.lane.b32.xlu0 %v877, 96
  %v1421 = vpop.permute.xlu0 %1420
  %1422 = vrot.lane.b32.xlu0 %v878, 96
  %v1423 = vpop.permute.xlu0 %1422
  %1424 = vrot.lane.b32.xlu0 %v879, 96
  %v1425 = vpop.permute.xlu0 %1424
  %1426 = vrot.lane.b32.xlu0 %v880, 96
  %v1427 = vpop.permute.xlu0 %1426
  %1432 = vst.msk [vmem:[#allocation2 + $0xb0] sm:$0xff] %vm1399, %v1421
  %1433 = vst.msk [vmem:[#allocation2 + $0xc0] sm:$0xff] %vm1399, %v1423
  %1434 = vst.msk [vmem:[#allocation2 + $0xd0] sm:$0xff] %vm1399, %v1425
  %1435 = vst.msk [vmem:[#allocation2 + $0xe0] sm:$0xff] %vm1399, %v1427
  %1436 = vrot.lane.b32.xlu0 %v882, 96
  %v1437 = vpop.permute.xlu0 %1436
  %1438 = vrot.lane.b32.xlu0 %v883, 96
  %v1439 = vpop.permute.xlu0 %1438
  %1440 = vrot.lane.b32.xlu0 %v884, 96
  %v1441 = vpop.permute.xlu0 %1440
  %1442 = vrot.lane.b32.xlu0 %v885, 96
  %v1443 = vpop.permute.xlu0 %1442
  %1448 = vst.msk [vmem:[#allocation2 + $0x100] sm:$0xff] %vm1399, %v1437
  %1449 = vst.msk [vmem:[#allocation2 + $0x110] sm:$0xff] %vm1399, %v1439
  %1450 = vst.msk [vmem:[#allocation2 + $0x120] sm:$0xff] %vm1399, %v1441
  %1451 = vst.msk [vmem:[#allocation2 + $0x130] sm:$0xff] %vm1399, %v1443
  %1452 = vrot.lane.b32.xlu0 %v867, 112
  %v1453 = vpop.permute.xlu0 %1452
  %1454 = vrot.lane.b32.xlu0 %v868, 112
  %v1455 = vpop.permute.xlu0 %1454
  %1456 = vrot.lane.b32.xlu0 %v869, 112
  %v1457 = vpop.permute.xlu0 %1456
  %1458 = vrot.lane.b32.xlu0 %v870, 112
  %v1459 = vpop.permute.xlu0 %1458
  %1460 = vrot.lane.b32.xlu0 %v871, 112
  %v1461 = vpop.permute.xlu0 %1460
  %vm1467 = vcmask 1048448
  %1468 = vst.msk [vmem:[#allocation2] sm:$0xff] %vm1467, %v1453
  %1469 = vst.msk [vmem:[#allocation2 + $0x10] sm:$0xff] %vm1467, %v1455
  %1470 = vst.msk [vmem:[#allocation2 + $0x20] sm:$0xff] %vm1467, %v1457
  %1471 = vst.msk [vmem:[#allocation2 + $0x30] sm:$0xff] %vm1467, %v1459
  %1472 = vst.msk [vmem:[#allocation2 + $0x40] sm:$0xff] %vm1467, %v1461
  %1473 = vrot.lane.b32.xlu0 %v872, 112
  %v1474 = vpop.permute.xlu0 %1473
  %1475 = vrot.lane.b32.xlu0 %v873, 112
  %v1476 = vpop.permute.xlu0 %1475
  %1477 = vrot.lane.b32.xlu0 %v874, 112
  %v1478 = vpop.permute.xlu0 %1477
  %1479 = vrot.lane.b32.xlu0 %v875, 112
  %v1480 = vpop.permute.xlu0 %1479
  %1481 = vrot.lane.b32.xlu0 %v876, 112
  %v1482 = vpop.permute.xlu0 %1481
  %1488 = vst.msk [vmem:[#allocation2 + $0x50] sm:$0xff] %vm1467, %v1474
  %1489 = vst.msk [vmem:[#allocation2 + $0x60] sm:$0xff] %vm1467, %v1476
  %1490 = vst.msk [vmem:[#allocation2 + $0x70] sm:$0xff] %vm1467, %v1478
  %1491 = vst.msk [vmem:[#allocation2 + $0x80] sm:$0xff] %vm1467, %v1480
  %1492 = vst.msk [vmem:[#allocation2 + $0x90] sm:$0xff] %vm1467, %v1482
  %1493 = vrot.lane.b32.xlu0 %v877, 112
  %v1494 = vpop.permute.xlu0 %1493
  %1495 = vrot.lane.b32.xlu0 %v878, 112
  %v1496 = vpop.permute.xlu0 %1495
  %1497 = vrot.lane.b32.xlu0 %v879, 112
  %v1498 = vpop.permute.xlu0 %1497
  %1499 = vrot.lane.b32.xlu0 %v880, 112
  %v1500 = vpop.permute.xlu0 %1499
  %1501 = vrot.lane.b32.xlu0 %v881, 112
  %v1502 = vpop.permute.xlu0 %1501
  %1508 = vst.msk [vmem:[#allocation2 + $0xa0] sm:$0xff] %vm1467, %v1494
  %1509 = vst.msk [vmem:[#allocation2 + $0xb0] sm:$0xff] %vm1467, %v1496
  %1510 = vst.msk [vmem:[#allocation2 + $0xc0] sm:$0xff] %vm1467, %v1498
  %1511 = vst.msk [vmem:[#allocation2 + $0xd0] sm:$0xff] %vm1467, %v1500
  %1512 = vst.msk [vmem:[#allocation2 + $0xe0] sm:$0xff] %vm1467, %v1502
  %1513 = vrot.lane.b32.xlu0 %v882, 112
  %v1514 = vpop.permute.xlu0 %1513
  %1515 = vrot.lane.b32.xlu0 %v883, 112
  %v1516 = vpop.permute.xlu0 %1515
  %1517 = vrot.lane.b32.xlu0 %v884, 112
  %v1518 = vpop.permute.xlu0 %1517
  %1519 = vrot.lane.b32.xlu0 %v885, 112
  %v1520 = vpop.permute.xlu0 %1519
  %1521 = vrot.lane.b32.xlu0 %v886, 112
  %v1522 = vpop.permute.xlu0 %1521
  %1528 = vst.msk [vmem:[#allocation2 + $0xf0] sm:$0xff] %vm1467, %v1514
  %1529 = vst.msk [vmem:[#allocation2 + $0x100] sm:$0xff] %vm1467, %v1516
  %1530 = vst.msk [vmem:[#allocation2 + $0x110] sm:$0xff] %vm1467, %v1518
  %1531 = vst.msk [vmem:[#allocation2 + $0x120] sm:$0xff] %vm1467, %v1520
  %1532 = vst.msk [vmem:[#allocation2 + $0x130] sm:$0xff] %vm1467, %v1522
  %1533 = vst.msk [vmem:[#allocation2 + $0x8] sm:$0xff] %vm140, %v868
  %1534 = vst.msk [vmem:[#allocation2 + $0x18] sm:$0xff] %vm140, %v869
  %1535 = vst.msk [vmem:[#allocation2 + $0x28] sm:$0xff] %vm140, %v870
  %1536 = vst.msk [vmem:[#allocation2 + $0x38] sm:$0xff] %vm140, %v871
  %1537 = vst.msk [vmem:[#allocation2 + $0x58] sm:$0xff] %vm140, %v873
  %1538 = vst.msk [vmem:[#allocation2 + $0x68] sm:$0xff] %vm140, %v874
  %1539 = vst.msk [vmem:[#allocation2 + $0x78] sm:$0xff] %vm140, %v875
  %1540 = vst.msk [vmem:[#allocation2 + $0x88] sm:$0xff] %vm140, %v876
  %1541 = vst.msk [vmem:[#allocation2 + $0xa8] sm:$0xff] %vm140, %v878
  %1542 = vst.msk [vmem:[#allocation2 + $0xb8] sm:$0xff] %vm140, %v879
  %1543 = vst.msk [vmem:[#allocation2 + $0xc8] sm:$0xff] %vm140, %v880
  %1544 = vst.msk [vmem:[#allocation2 + $0xd8] sm:$0xff] %vm140, %v881
  %1545 = vst.msk [vmem:[#allocation2 + $0xf8] sm:$0xff] %vm140, %v883
  %1546 = vst.msk [vmem:[#allocation2 + $0x108] sm:$0xff] %vm140, %v884
  %1547 = vst.msk [vmem:[#allocation2 + $0x118] sm:$0xff] %vm140, %v885
  %1548 = vst.msk [vmem:[#allocation2 + $0x128] sm:$0xff] %vm140, %v886
  %v1549 = vld [vmem:[#allocation2] sm:$0xff]
  %v1550 = vld [vmem:[#allocation2 + $0x8] sm:$0xff]
  %v1551 = vld [vmem:[#allocation2 + $0x10] sm:$0xff]
  %v1552 = vld [vmem:[#allocation2 + $0x18] sm:$0xff]
  %v1553 = vld [vmem:[#allocation2 + $0x20] sm:$0xff]
  %v1554 = vld [vmem:[#allocation2 + $0x28] sm:$0xff]
  %v1555 = vld [vmem:[#allocation2 + $0x30] sm:$0xff]
  %v1556 = vld [vmem:[#allocation2 + $0x38] sm:$0xff]
  %v1557 = vld [vmem:[#allocation2 + $0x40] sm:$0xff]
  %v1558 = vld [vmem:[#allocation2 + $0x48] sm:$0xff]
  %v1559 = vld [vmem:[#allocation2 + $0x50] sm:$0xff]
  %v1560 = vld [vmem:[#allocation2 + $0x58] sm:$0xff]
  %v1561 = vld [vmem:[#allocation2 + $0x60] sm:$0xff]
  %v1562 = vld [vmem:[#allocation2 + $0x68] sm:$0xff]
  %v1563 = vld [vmem:[#allocation2 + $0x70] sm:$0xff]
  %v1564 = vld [vmem:[#allocation2 + $0x78] sm:$0xff]
  %v1565 = vld [vmem:[#allocation2 + $0x80] sm:$0xff]
  %v1566 = vld [vmem:[#allocation2 + $0x88] sm:$0xff]
  %v1567 = vld [vmem:[#allocation2 + $0x90] sm:$0xff]
  %v1568 = vld [vmem:[#allocation2 + $0x98] sm:$0xff]
  %v1569 = vld [vmem:[#allocation2 + $0xa0] sm:$0xff]
  %v1570 = vld [vmem:[#allocation2 + $0xa8] sm:$0xff]
  %v1571 = vld [vmem:[#allocation2 + $0xb0] sm:$0xff]
  %v1572 = vld [vmem:[#allocation2 + $0xb8] sm:$0xff]
  %v1573 = vld [vmem:[#allocation2 + $0xc0] sm:$0xff]
  %v1574 = vld [vmem:[#allocation2 + $0xc8] sm:$0xff]
  %v1575 = vld [vmem:[#allocation2 + $0xd0] sm:$0xff]
  %v1576 = vld [vmem:[#allocation2 + $0xd8] sm:$0xff]
  %v1577 = vld [vmem:[#allocation2 + $0xe0] sm:$0xff]
  %v1578 = vld [vmem:[#allocation2 + $0xe8] sm:$0xff]
  %v1579 = vld [vmem:[#allocation2 + $0xf0] sm:$0xff]
  %v1580 = vld [vmem:[#allocation2 + $0xf8] sm:$0xff]
  %v1581 = vld [vmem:[#allocation2 + $0x100] sm:$0xff]
  %v1582 = vld [vmem:[#allocation2 + $0x108] sm:$0xff]
  %v1583 = vld [vmem:[#allocation2 + $0x110] sm:$0xff]
  %v1584 = vld [vmem:[#allocation2 + $0x118] sm:$0xff]
  %v1585 = vld [vmem:[#allocation2 + $0x120] sm:$0xff]
  %v1586 = vld [vmem:[#allocation2 + $0x128] sm:$0xff]
  %v1587 = vld [vmem:[#allocation2 + $0x130] sm:$0xff]
  %v1588 = vld [vmem:[#allocation2 + $0x138] sm:$0xff]
  %v1589 = vld [vmem:[#allocation2 + $0x140] sm:$0xff]
  %v1590 = vld [vmem:[#allocation2 + $0x148] sm:$0xff]
  %v1591 = vld [vmem:[#allocation2 + $0x150] sm:$0xff]
  %v1592 = vld [vmem:[#allocation2 + $0x158] sm:$0xff]
  %v1593 = vld [vmem:[#allocation2 + $0x160] sm:$0xff]
  %v1594 = vld [vmem:[#allocation2 + $0x168] sm:$0xff]
  %v1595 = vld [vmem:[#allocation2 + $0x170] sm:$0xff]
  %v1596 = vld [vmem:[#allocation2 + $0x178] sm:$0xff]
  %v1597 = vld [vmem:[#allocation2 + $0x180] sm:$0xff]
  %v1598 = vld [vmem:[#allocation2 + $0x188] sm:$0xff]
  %v1599 = vld [vmem:[%s3] sm:$0xff]
  %v1600 = vld [vmem:[%s3 + $0x8] sm:$0xff]
  %v1601 = vld [vmem:[%s3 + $0x10] sm:$0xff]
  %v1602 = vld [vmem:[%s3 + $0x18] sm:$0xff]
  %v1603 = vld [vmem:[%s3 + $0x20] sm:$0xff]
  %v1604 = vld [vmem:[%s3 + $0x28] sm:$0xff]
  %v1605 = vld [vmem:[%s3 + $0x30] sm:$0xff]
  %v1606 = vld [vmem:[%s3 + $0x38] sm:$0xff]
  %v1607 = vld [vmem:[%s3 + $0x40] sm:$0xff]
  %v1608 = vld [vmem:[%s3 + $0x48] sm:$0xff]
  %v1609 = vld [vmem:[%s3 + $0x50] sm:$0xff]
  %v1610 = vld [vmem:[%s3 + $0x58] sm:$0xff]
  %v1611 = vld [vmem:[%s3 + $0x60] sm:$0xff]
  %v1612 = vld [vmem:[%s3 + $0x68] sm:$0xff]
  %v1613 = vld [vmem:[%s3 + $0x70] sm:$0xff]
  %v1614 = vld [vmem:[%s3 + $0x78] sm:$0xff]
  %v1615 = vld [vmem:[%s3 + $0x80] sm:$0xff]
  %v1616 = vld [vmem:[%s3 + $0x88] sm:$0xff]
  %v1617 = vld [vmem:[%s4] sm:$0x1]
  %v1619 = vperm.slane %v1617, 0
  %v1622 = vsel %vm140, %v1550, 0
  %v1625 = vsel %vm140, %v1552, 0
  %v1628 = vsel %vm140, %v1554, 0
  %v1631 = vsel %vm140, %v1556, 0
  %v1634 = vsel %vm140, %v1558, 0
  %v1637 = vsel %vm140, %v1560, 0
  %v1640 = vsel %vm140, %v1562, 0
  %v1643 = vsel %vm140, %v1564, 0
  %v1646 = vsel %vm140, %v1566, 0
  %v1649 = vsel %vm140, %v1568, 0
  %v1652 = vsel %vm140, %v1570, 0
  %v1655 = vsel %vm140, %v1572, 0
  %v1658 = vsel %vm140, %v1574, 0
  %v1661 = vsel %vm140, %v1576, 0
  %v1664 = vsel %vm140, %v1578, 0
  %v1667 = vsel %vm140, %v1580, 0
  %v1670 = vsel %vm140, %v1582, 0
  %v1673 = vsel %vm140, %v1584, 0
  %v1676 = vsel %vm140, %v1586, 0
  %v1679 = vsel %vm140, %v1588, 0
  %v1682 = vsel %vm140, %v1590, 0
  %v1685 = vsel %vm140, %v1592, 0
  %v1688 = vsel %vm140, %v1594, 0
  %v1691 = vsel %vm140, %v1596, 0
  %v1694 = vsel %vm140, %v1598, 0
  %1696 = vmatpush.msra.mxu0 %v1614
  %1697 = vmatpush.msra.mxu0 %v1613
  %1698 = vmatpush.msra.mxu0 %v1612
  %1699 = vmatpush.msra.mxu0 %v1611
  %1700 = vmatpush.msra.mxu0 %v1610
  %1701 = vmatpush.msra.mxu0 %v1609
  %1702 = vmatpush.msra.mxu0 %v1608
  %1703 = vmatpush.msra.mxu0 %v1607
  %1704 = vmatpush.msra.mxu0 %v1606
  %1705 = vmatpush.msra.mxu0 %v1605
  %1706 = vmatpush.msra.mxu0 %v1604
  %1707 = vmatpush.msra.mxu0 %v1603
  %1708 = vmatpush.msra.mxu0 %v1602
  %1709 = vmatpush.msra.mxu0 %v1601
  %1710 = vmatpush.msra.mxu0 %v1600
  %1711 = vmatpush.msra.mxu0 %v1599
  %1712 = vmatmul.f32.gmra.mxu0 %v1549
  %v1713 = vpop.f32.mrf.mxu0
  %v1714 = vadd.f32 %v1619, %v1713
  %1715 = vmatmul.f32.gmra.mxu0 %v1551
  %v1716 = vpop.f32.mrf.mxu0
  %v1717 = vadd.f32 %v1619, %v1716
  %1718 = vmatmul.f32.gmra.mxu0 %v1553
  %v1719 = vpop.f32.mrf.mxu0
  %v1720 = vadd.f32 %v1619, %v1719
  %1721 = vmatmul.f32.gmra.mxu0 %v1555
  %v1722 = vpop.f32.mrf.mxu0
  %v1723 = vadd.f32 %v1619, %v1722
  %1724 = vmatmul.f32.gmra.mxu0 %v1557
  %v1725 = vpop.f32.mrf.mxu0
  %v1726 = vadd.f32 %v1619, %v1725
  %1727 = vmatmul.f32.gmra.mxu0 %v1559
  %v1728 = vpop.f32.mrf.mxu0
  %v1729 = vadd.f32 %v1619, %v1728
  %1730 = vmatmul.f32.gmra.mxu0 %v1561
  %v1731 = vpop.f32.mrf.mxu0
  %v1732 = vadd.f32 %v1619, %v1731
  %1733 = vmatmul.f32.gmra.mxu0 %v1563
  %v1734 = vpop.f32.mrf.mxu0
  %v1735 = vadd.f32 %v1619, %v1734
  %1736 = vmatmul.f32.gmra.mxu0 %v1565
  %v1737 = vpop.f32.mrf.mxu0
  %v1738 = vadd.f32 %v1619, %v1737
  %1739 = vmatmul.f32.gmra.mxu0 %v1567
  %v1740 = vpop.f32.mrf.mxu0
  %v1741 = vadd.f32 %v1619, %v1740
  %1742 = vmatmul.f32.gmra.mxu0 %v1569
  %v1743 = vpop.f32.mrf.mxu0
  %v1744 = vadd.f32 %v1619, %v1743
  %1745 = vmatmul.f32.gmra.mxu0 %v1571
  %v1746 = vpop.f32.mrf.mxu0
  %v1747 = vadd.f32 %v1619, %v1746
  %1748 = vmatmul.f32.gmra.mxu0 %v1573
  %v1749 = vpop.f32.mrf.mxu0
  %v1750 = vadd.f32 %v1619, %v1749
  %1751 = vmatmul.f32.gmra.mxu0 %v1575
  %v1752 = vpop.f32.mrf.mxu0
  %v1753 = vadd.f32 %v1619, %v1752
  %1754 = vmatmul.f32.gmra.mxu0 %v1577
  %v1755 = vpop.f32.mrf.mxu0
  %v1756 = vadd.f32 %v1619, %v1755
  %1757 = vmatmul.f32.gmra.mxu0 %v1579
  %v1758 = vpop.f32.mrf.mxu0
  %v1759 = vadd.f32 %v1619, %v1758
  %1760 = vmatmul.f32.gmra.mxu0 %v1581
  %v1761 = vpop.f32.mrf.mxu0
  %v1762 = vadd.f32 %v1619, %v1761
  %1763 = vmatmul.f32.gmra.mxu0 %v1583
  %v1764 = vpop.f32.mrf.mxu0
  %v1765 = vadd.f32 %v1619, %v1764
  %1766 = vmatmul.f32.gmra.mxu0 %v1585
  %v1767 = vpop.f32.mrf.mxu0
  %v1768 = vadd.f32 %v1619, %v1767
  %1769 = vmatmul.f32.gmra.mxu0 %v1587
  %v1770 = vpop.f32.mrf.mxu0
  %v1771 = vadd.f32 %v1619, %v1770
  %1772 = vmatmul.f32.gmra.mxu0 %v1589
  %v1773 = vpop.f32.mrf.mxu0
  %v1774 = vadd.f32 %v1619, %v1773
  %1775 = vmatmul.f32.gmra.mxu0 %v1591
  %v1776 = vpop.f32.mrf.mxu0
  %v1777 = vadd.f32 %v1619, %v1776
  %1778 = vmatmul.f32.gmra.mxu0 %v1593
  %v1779 = vpop.f32.mrf.mxu0
  %v1780 = vadd.f32 %v1619, %v1779
  %1781 = vmatmul.f32.gmra.mxu0 %v1595
  %v1782 = vpop.f32.mrf.mxu0
  %v1783 = vadd.f32 %v1619, %v1782
  %1784 = vmatmul.f32.gmra.mxu0 %v1597
  %v1785 = vpop.f32.mrf.mxu0
  %v1786 = vadd.f32 %v1619, %v1785
  %1787 = vdwg.mxu0
  %1788 = vmatpush.msra.mxu0 0.0
  %1789 = vmatpush.msra.mxu0 0.0
  %1790 = vmatpush.msra.mxu0 0.0
  %1791 = vmatpush.msra.mxu0 0.0
  %1792 = vmatpush.msra.mxu0 0.0
  %1793 = vmatpush.msra.mxu0 0.0
  %1794 = vmatpush.msra.mxu0 0.0
  %1795 = vmatpush.msra.mxu0 0.0
  %1796 = vmatpush.msra.mxu0 0.0
  %1797 = vmatpush.msra.mxu0 0.0
  %1798 = vmatpush.msra.mxu0 0.0
  %1799 = vmatpush.msra.mxu0 0.0
  %1800 = vmatpush.msra.mxu0 0.0
  %1801 = vmatpush.msra.mxu0 0.0
  %1802 = vmatpush.msra.mxu0 %v1616
  %1803 = vmatpush.msra.mxu0 %v1615
  %1804 = vmatmul.f32.gmra.mxu0 %v1622
  %v1805 = vpop.f32.mrf.mxu0
  %v1806 = vadd.f32 %v1714, %v1805
  %1807 = vmatmul.f32.gmra.mxu0 %v1625
  %v1808 = vpop.f32.mrf.mxu0
  %v1809 = vadd.f32 %v1717, %v1808
  %1810 = vmatmul.f32.gmra.mxu0 %v1628
  %v1811 = vpop.f32.mrf.mxu0
  %v1812 = vadd.f32 %v1720, %v1811
  %1813 = vmatmul.f32.gmra.mxu0 %v1631
  %v1814 = vpop.f32.mrf.mxu0
  %v1815 = vadd.f32 %v1723, %v1814
  %1816 = vmatmul.f32.gmra.mxu0 %v1634
  %v1817 = vpop.f32.mrf.mxu0
  %v1818 = vadd.f32 %v1726, %v1817
  %1819 = vmatmul.f32.gmra.mxu0 %v1637
  %v1820 = vpop.f32.mrf.mxu0
  %v1821 = vadd.f32 %v1729, %v1820
  %1822 = vmatmul.f32.gmra.mxu0 %v1640
  %v1823 = vpop.f32.mrf.mxu0
  %v1824 = vadd.f32 %v1732, %v1823
  %1825 = vmatmul.f32.gmra.mxu0 %v1643
  %v1826 = vpop.f32.mrf.mxu0
  %v1827 = vadd.f32 %v1735, %v1826
  %1828 = vmatmul.f32.gmra.mxu0 %v1646
  %v1829 = vpop.f32.mrf.mxu0
  %v1830 = vadd.f32 %v1738, %v1829
  %1831 = vmatmul.f32.gmra.mxu0 %v1649
  %v1832 = vpop.f32.mrf.mxu0
  %v1833 = vadd.f32 %v1741, %v1832
  %1834 = vmatmul.f32.gmra.mxu0 %v1652
  %v1835 = vpop.f32.mrf.mxu0
  %v1836 = vadd.f32 %v1744, %v1835
  %1837 = vmatmul.f32.gmra.mxu0 %v1655
  %v1838 = vpop.f32.mrf.mxu0
  %v1839 = vadd.f32 %v1747, %v1838
  %1840 = vmatmul.f32.gmra.mxu0 %v1658
  %v1841 = vpop.f32.mrf.mxu0
  %v1842 = vadd.f32 %v1750, %v1841
  %1843 = vmatmul.f32.gmra.mxu0 %v1661
  %v1844 = vpop.f32.mrf.mxu0
  %v1845 = vadd.f32 %v1753, %v1844
  %1846 = vmatmul.f32.gmra.mxu0 %v1664
  %v1847 = vpop.f32.mrf.mxu0
  %v1848 = vadd.f32 %v1756, %v1847
  %1849 = vmatmul.f32.gmra.mxu0 %v1667
  %v1850 = vpop.f32.mrf.mxu0
  %v1851 = vadd.f32 %v1759, %v1850
  %1852 = vmatmul.f32.gmra.mxu0 %v1670
  %v1853 = vpop.f32.mrf.mxu0
  %v1854 = vadd.f32 %v1762, %v1853
  %1855 = vmatmul.f32.gmra.mxu0 %v1673
  %v1856 = vpop.f32.mrf.mxu0
  %v1857 = vadd.f32 %v1765, %v1856
  %1858 = vmatmul.f32.gmra.mxu0 %v1676
  %v1859 = vpop.f32.mrf.mxu0
  %v1860 = vadd.f32 %v1768, %v1859
  %1861 = vmatmul.f32.gmra.mxu0 %v1679
  %v1862 = vpop.f32.mrf.mxu0
  %v1863 = vadd.f32 %v1771, %v1862
  %1864 = vmatmul.f32.gmra.mxu0 %v1682
  %v1865 = vpop.f32.mrf.mxu0
  %v1866 = vadd.f32 %v1774, %v1865
  %1867 = vmatmul.f32.gmra.mxu0 %v1685
  %v1868 = vpop.f32.mrf.mxu0
  %v1869 = vadd.f32 %v1777, %v1868
  %1870 = vmatmul.f32.gmra.mxu0 %v1688
  %v1871 = vpop.f32.mrf.mxu0
  %v1872 = vadd.f32 %v1780, %v1871
  %1873 = vmatmul.f32.gmra.mxu0 %v1691
  %v1874 = vpop.f32.mrf.mxu0
  %v1875 = vadd.f32 %v1783, %v1874
  %1876 = vmatmul.f32.gmra.mxu0 %v1694
  %v1877 = vpop.f32.mrf.mxu0
  %v1878 = vadd.f32 %v1786, %v1877
  %1879 = vdwg.mxu0
  %v1880 = vmax.f32 %v1806, 0.0
  %v1881 = vmax.f32 %v1809, 0.0
  %v1882 = vmax.f32 %v1812, 0.0
  %v1883 = vmax.f32 %v1815, 0.0
  %v1884 = vmax.f32 %v1818, 0.0
  %v1885 = vmax.f32 %v1821, 0.0
  %v1886 = vmax.f32 %v1824, 0.0
  %v1887 = vmax.f32 %v1827, 0.0
  %v1888 = vmax.f32 %v1830, 0.0
  %v1889 = vmax.f32 %v1833, 0.0
  %v1890 = vmax.f32 %v1836, 0.0
  %v1891 = vmax.f32 %v1839, 0.0
  %v1892 = vmax.f32 %v1842, 0.0
  %v1893 = vmax.f32 %v1845, 0.0
  %v1894 = vmax.f32 %v1848, 0.0
  %v1895 = vmax.f32 %v1851, 0.0
  %v1896 = vmax.f32 %v1854, 0.0
  %v1897 = vmax.f32 %v1857, 0.0
  %v1898 = vmax.f32 %v1860, 0.0
  %v1899 = vmax.f32 %v1863, 0.0
  %v1900 = vmax.f32 %v1866, 0.0
  %v1901 = vmax.f32 %v1869, 0.0
  %v1902 = vmax.f32 %v1872, 0.0
  %v1903 = vmax.f32 %v1875, 0.0
  %v1904 = vmax.f32 %v1878, 0.0
  %vm1905 = vcmask 64512
  %1906 = vst.msk [vmem:[#allocation3] sm:$0xff] %vm1905, %v1880
  %1908 = vrot.lane.b32.xlu0 %v1881, 8
  %v1909 = vpop.permute.xlu0 %1908
  %vm1911 = vcmask 130112
  %1912 = vst.msk [vmem:[#allocation3] sm:$0xff] %vm1911, %v1909
  %1914 = vrot.lane.b32.xlu0 %v1882, 16
  %v1915 = vpop.permute.xlu0 %1914
  %vm1917 = vcmask 195712
  %1918 = vst.msk [vmem:[#allocation3] sm:$0xff] %vm1917, %v1915
  %1920 = vrot.lane.b32.xlu0 %v1883, 24
  %v1921 = vpop.permute.xlu0 %1920
  %vm1923 = vcmask 261312
  %1924 = vst.msk [vmem:[#allocation3] sm:$0xff] %vm1923, %v1921
  %1926 = vrot.lane.b32.xlu0 %v1884, 32
  %v1927 = vpop.permute.xlu0 %1926
  %vm1929 = vcmask 326912
  %1930 = vst.msk [vmem:[#allocation3] sm:$0xff] %vm1929, %v1927
  %1932 = vrot.lane.b32.xlu0 %v1885, 40
  %v1933 = vpop.permute.xlu0 %1932
  %vm1935 = vcmask 392512
  %1936 = vst.msk [vmem:[#allocation3] sm:$0xff] %vm1935, %v1933
  %1938 = vrot.lane.b32.xlu0 %v1886, 48
  %v1939 = vpop.permute.xlu0 %1938
  %vm1941 = vcmask 458112
  %1942 = vst.msk [vmem:[#allocation3] sm:$0xff] %vm1941, %v1939
  %1944 = vrot.lane.b32.xlu0 %v1887, 56
  %v1945 = vpop.permute.xlu0 %1944
  %vm1947 = vcmask 523712
  %1948 = vst.msk [vmem:[#allocation3] sm:$0xff] %vm1947, %v1945
  %1950 = vrot.lane.b32.xlu0 %v1888, 64
  %v1951 = vpop.permute.xlu0 %1950
  %vm1953 = vcmask 589312
  %1954 = vst.msk [vmem:[#allocation3] sm:$0xff] %vm1953, %v1951
  %1956 = vrot.lane.b32.xlu0 %v1889, 72
  %v1957 = vpop.permute.xlu0 %1956
  %vm1959 = vcmask 654912
  %1960 = vst.msk [vmem:[#allocation3] sm:$0xff] %vm1959, %v1957
  %1962 = vrot.lane.b32.xlu0 %v1890, 80
  %v1963 = vpop.permute.xlu0 %1962
  %vm1965 = vcmask 720512
  %1966 = vst.msk [vmem:[#allocation3] sm:$0xff] %vm1965, %v1963
  %1968 = vrot.lane.b32.xlu0 %v1891, 88
  %v1969 = vpop.permute.xlu0 %1968
  %vm1971 = vcmask 786112
  %1972 = vst.msk [vmem:[#allocation3] sm:$0xff] %vm1971, %v1969
  %1974 = vrot.lane.b32.xlu0 %v1892, 96
  %v1975 = vpop.permute.xlu0 %1974
  %vm1977 = vcmask 851712
  %1978 = vst.msk [vmem:[#allocation3] sm:$0xff] %vm1977, %v1975
  %1980 = vrot.lane.b32.xlu0 %v1893, 104
  %v1981 = vpop.permute.xlu0 %1980
  %vm1983 = vcmask 917312
  %1984 = vst.msk [vmem:[#allocation3] sm:$0xff] %vm1983, %v1981
  %1986 = vrot.lane.b32.xlu0 %v1894, 112
  %v1987 = vpop.permute.xlu0 %1986
  %vm1989 = vcmask 982912
  %1990 = vst.msk [vmem:[#allocation3] sm:$0xff] %vm1989, %v1987
  %1992 = vrot.lane.b32.xlu0 %v1895, 120
  %v1993 = vpop.permute.xlu0 %1992
  %vm1995 = vcmask 1048512
  %1996 = vst.msk [vmem:[#allocation3] sm:$0xff] %vm1995, %v1993
  %1997 = vst.msk [vmem:[#allocation3 + $0x8] sm:$0xff] %vm1905, %v1896
  %1999 = vrot.lane.b32.xlu0 %v1897, 8
  %v2000 = vpop.permute.xlu0 %1999
  %2002 = vst.msk [vmem:[#allocation3 + $0x8] sm:$0xff] %vm1911, %v2000
  %2004 = vrot.lane.b32.xlu0 %v1898, 16
  %v2005 = vpop.permute.xlu0 %2004
  %2007 = vst.msk [vmem:[#allocation3 + $0x8] sm:$0xff] %vm1917, %v2005
  %2009 = vrot.lane.b32.xlu0 %v1899, 24
  %v2010 = vpop.permute.xlu0 %2009
  %2012 = vst.msk [vmem:[#allocation3 + $0x8] sm:$0xff] %vm1923, %v2010
  %2014 = vrot.lane.b32.xlu0 %v1900, 32
  %v2015 = vpop.permute.xlu0 %2014
  %2017 = vst.msk [vmem:[#allocation3 + $0x8] sm:$0xff] %vm1929, %v2015
  %2019 = vrot.lane.b32.xlu0 %v1901, 40
  %v2020 = vpop.permute.xlu0 %2019
  %2022 = vst.msk [vmem:[#allocation3 + $0x8] sm:$0xff] %vm1935, %v2020
  %2024 = vrot.lane.b32.xlu0 %v1902, 48
  %v2025 = vpop.permute.xlu0 %2024
  %2027 = vst.msk [vmem:[#allocation3 + $0x8] sm:$0xff] %vm1941, %v2025
  %2029 = vrot.lane.b32.xlu0 %v1903, 56
  %v2030 = vpop.permute.xlu0 %2029
  %2032 = vst.msk [vmem:[#allocation3 + $0x8] sm:$0xff] %vm1947, %v2030
  %2034 = vrot.lane.b32.xlu0 %v1904, 64
  %v2035 = vpop.permute.xlu0 %2034
  %2037 = vst.msk [vmem:[#allocation3 + $0x8] sm:$0xff] %vm1953, %v2035
  %v2038 = vld [vmem:[#allocation3] sm:$0xff]
  %v2039 = vld [vmem:[#allocation3 + $0x8] sm:$0xff]
  %v2040 = vld [vmem:[%s5] sm:$0xff]
  %v2041 = vld [vmem:[%s5 + $0x8] sm:$0xff]
  %v2042 = vld [vmem:[%s5 + $0x10] sm:$0xff]
  %v2043 = vld [vmem:[%s5 + $0x18] sm:$0xff]
  %v2044 = vld [vmem:[%s5 + $0x20] sm:$0xff]
  %v2045 = vld [vmem:[%s5 + $0x28] sm:$0xff]
  %v2046 = vld [vmem:[%s5 + $0x30] sm:$0xff]
  %v2047 = vld [vmem:[%s5 + $0x38] sm:$0xff]
  %v2048 = vld [vmem:[%s5 + $0x40] sm:$0xff]
  %v2049 = vld [vmem:[%s5 + $0x48] sm:$0xff]
  %v2050 = vld [vmem:[%s5 + $0x50] sm:$0xff]
  %v2051 = vld [vmem:[%s5 + $0x58] sm:$0xff]
  %v2052 = vld [vmem:[%s5 + $0x60] sm:$0xff]
  %v2053 = vld [vmem:[%s5 + $0x68] sm:$0xff]
  %v2054 = vld [vmem:[%s5 + $0x70] sm:$0xff]
  %v2055 = vld [vmem:[%s5 + $0x78] sm:$0xff]
  %v2056 = vld [vmem:[%s5 + $0x80] sm:$0xff]
  %v2057 = vld [vmem:[%s5 + $0x88] sm:$0xff]
  %v2058 = vld [vmem:[%s5 + $0x90] sm:$0xff]
  %v2059 = vld [vmem:[%s5 + $0x98] sm:$0xff]
  %v2060 = vld [vmem:[%s5 + $0xa0] sm:$0xff]
  %v2061 = vld [vmem:[%s5 + $0xa8] sm:$0xff]
  %v2062 = vld [vmem:[%s5 + $0xb0] sm:$0xff]
  %v2063 = vld [vmem:[%s5 + $0xb8] sm:$0xff]
  %v2064 = vld [vmem:[%s5 + $0xc0] sm:$0xff]
  %v2065 = vld [vmem:[%s6] sm:$0x1]
  %v2067 = vperm.slane %v2065, 0
  %vm2069 = vcmask 588800
  %v2071 = vsel %vm2069, %v2039, 0
  %2073 = vmatpush.msra.mxu0 %v2055
  %2074 = vmatpush.msra.mxu0 %v2054
  %2075 = vmatpush.msra.mxu0 %v2053
  %2076 = vmatpush.msra.mxu0 %v2052
  %2077 = vmatpush.msra.mxu0 %v2051
  %2078 = vmatpush.msra.mxu0 %v2050
  %2079 = vmatpush.msra.mxu0 %v2049
  %2080 = vmatpush.msra.mxu0 %v2048
  %2081 = vmatpush.msra.mxu0 %v2047
  %2082 = vmatpush.msra.mxu0 %v2046
  %2083 = vmatpush.msra.mxu0 %v2045
  %2084 = vmatpush.msra.mxu0 %v2044
  %2085 = vmatpush.msra.mxu0 %v2043
  %2086 = vmatpush.msra.mxu0 %v2042
  %2087 = vmatpush.msra.mxu0 %v2041
  %2088 = vmatpush.msra.mxu0 %v2040
  %2089 = vmatmul.f32.gmra.mxu0 %v2038
  %v2090 = vpop.f32.mrf.mxu0
  %v2091 = vadd.f32 %v2067, %v2090
  %2092 = vdwg.mxu0
  %2093 = vmatpush.msra.mxu0 0.0
  %2094 = vmatpush.msra.mxu0 0.0
  %2095 = vmatpush.msra.mxu0 0.0
  %2096 = vmatpush.msra.mxu0 0.0
  %2097 = vmatpush.msra.mxu0 0.0
  %2098 = vmatpush.msra.mxu0 0.0
  %2099 = vmatpush.msra.mxu0 0.0
  %2100 = vmatpush.msra.mxu0 %v2064
  %2101 = vmatpush.msra.mxu0 %v2063
  %2102 = vmatpush.msra.mxu0 %v2062
  %2103 = vmatpush.msra.mxu0 %v2061
  %2104 = vmatpush.msra.mxu0 %v2060
  %2105 = vmatpush.msra.mxu0 %v2059
  %2106 = vmatpush.msra.mxu0 %v2058
  %2107 = vmatpush.msra.mxu0 %v2057
  %2108 = vmatpush.msra.mxu0 %v2056
  %2109 = vmatmul.f32.gmra.mxu0 %v2071
  %v2110 = vpop.f32.mrf.mxu0
  %v2111 = vadd.f32 %v2091, %v2110
  %2112 = vdwg.mxu0
  %v2113 = vmax.f32 %v2111, 0.0
  %v2114 = vld [vmem:[%s7] sm:$0xff]
  %v2115 = vld [vmem:[%s7 + $0x8] sm:$0xff]
  %v2116 = vld [vmem:[%s7 + $0x10] sm:$0xff]
  %v2117 = vld [vmem:[%s7 + $0x18] sm:$0xff]
  %v2118 = vld [vmem:[%s7 + $0x20] sm:$0xff]
  %v2119 = vld [vmem:[%s7 + $0x28] sm:$0xff]
  %v2120 = vld [vmem:[%s7 + $0x30] sm:$0xff]
  %v2121 = vld [vmem:[%s7 + $0x38] sm:$0xff]
  %v2122 = vld [vmem:[%s7 + $0x40] sm:$0xff]
  %v2123 = vld [vmem:[%s7 + $0x48] sm:$0xff]
  %v2124 = vld [vmem:[%s7 + $0x50] sm:$0xff]
  %v2125 = vld [vmem:[%s7 + $0x58] sm:$0xff]
  %v2126 = vld [vmem:[%s7 + $0x60] sm:$0xf]
  %v2127 = vld [vmem:[%s8] sm:$0x1]
  %v2129 = vperm.slane %v2127, 0
  %vm2131 = vcmask 818176
  %v2133 = vsel %vm2131, %v2113, 0
  %vm2135 = vcmask 1043456
  %v2137 = vsel %vm2135, %v2126, 0
  %2139 = vmatpush.msra.mxu0 0.0
  %2140 = vmatpush.msra.mxu0 0.0
  %2141 = vmatpush.msra.mxu0 0.0
  %2142 = vmatpush.msra.mxu0 %v2137
  %2143 = vmatpush.msra.mxu0 %v2125
  %2144 = vmatpush.msra.mxu0 %v2124
  %2145 = vmatpush.msra.mxu0 %v2123
  %2146 = vmatpush.msra.mxu0 %v2122
  %2147 = vmatpush.msra.mxu0 %v2121
  %2148 = vmatpush.msra.mxu0 %v2120
  %2149 = vmatpush.msra.mxu0 %v2119
  %2150 = vmatpush.msra.mxu0 %v2118
  %2151 = vmatpush.msra.mxu0 %v2117
  %2152 = vmatpush.msra.mxu0 %v2116
  %2153 = vmatpush.msra.mxu0 %v2115
  %2154 = vmatpush.msra.mxu0 %v2114
  %2155 = vmatmul.f32.gmra.mxu0 %v2133
  %v2156 = vpop.f32.mrf.mxu0
  %v2157 = vadd.f32 %v2129, %v2156
  %2158 = vdwg.mxu0
  %v2159 = vmax.f32 %v2157, 0.0
  %v2160 = vld [vmem:[%s9] sm:$0xff]
  %v2161 = vld [vmem:[%s9 + $0x8] sm:$0xff]
  %v2162 = vld [vmem:[%s9 + $0x10] sm:$0xff]
  %v2163 = vld [vmem:[%s9 + $0x18] sm:$0xff]
  %v2164 = vld [vmem:[%s9 + $0x20] sm:$0xff]
  %v2165 = vld [vmem:[%s10] sm:$0x1]
  %v2167 = vperm.slane %v2165, 0
  %vm2169 = vcmask 326656
  %v2171 = vsel %vm2169, %v2159, 0
  %2173 = vmatpush.msra.mxu0 0.0
  %2174 = vmatpush.msra.mxu0 0.0
  %2175 = vmatpush.msra.mxu0 0.0
  %2176 = vmatpush.msra.mxu0 0.0
  %2177 = vmatpush.msra.mxu0 0.0
  %2178 = vmatpush.msra.mxu0 0.0
  %2179 = vmatpush.msra.mxu0 0.0
  %2180 = vmatpush.msra.mxu0 0.0
  %2181 = vmatpush.msra.mxu0 0.0
  %2182 = vmatpush.msra.mxu0 0.0
  %2183 = vmatpush.msra.mxu0 0.0
  %2184 = vmatpush.msra.mxu0 %v2164
  %2185 = vmatpush.msra.mxu0 %v2163
  %2186 = vmatpush.msra.mxu0 %v2162
  %2187 = vmatpush.msra.mxu0 %v2161
  %2188 = vmatpush.msra.mxu0 %v2160
  %2189 = vmatmul.f32.gmra.mxu0 %v2171
  %v2190 = vpop.f32.mrf.mxu0
  %v2191 = vadd.f32 %v2167, %v2190
  %2192 = vdwg.mxu0
  %v2193 = vxor.u32 %v2191, 2147483648
  %v2194 = vmul.f32 %v2193, 1.442695
  %v2195 = vpow.pop %v2194
  %v2196 = vadd.f32 %v2195, 1.0
  %v2197 = vrcp.pop %v2196
  %v2198 = vmul.f32 %v2196, %v2197
  %v2199 = vsub.f32 1.0, %v2198
  %v2200 = vmul.f32 %v2197, %v2199
  %v2201 = vadd.f32 %v2197, %v2200
  %vm2202 = vweird.f32 %v2196
  %vm2203 = vweird.f32 %v2197
  %vm2204 = vmor %vm2202, %vm2203
  %v2205 = vsel %vm2204, %v2197, %v2201
  %v2206 = vand.u32 2147483647, %v2196
  %vm2207 = vcmp.eq.f32.partialorder %v2206, 8.507059e+37
  %v2208 = vand.u32 %v2196, 2147483648
  %v2209 = vor.u32 1.1754944e-38, %v2208
  %v2210 = vsel %vm2207, %v2209, %v2205
  %v2211 = vmul.f32 1.0, %v2210
  %2212 = vst [vmem:[%s11] sm:$0xff] %v2211
  // Predicated region
  $region46: #{forward.1} parent=0 // pred_check
    _
  $region47: #{forward.1} parent=0 // pred_check_branch
    %2214 = sbr.rel (0) target = $region49
  $region48: #{forward.1} parent=0 // pred_region
    _
  $region49: #{forward.1} parent=0 // pred_fallthru
    _
  // Predicated region
  $region50: #{forward.1} parent=0 // pred_check
    _
  $region51: #{forward.1} parent=0 // pred_check_branch
    %2216 = sbr.rel (0) target = $region53
  $region52: #{forward.1} parent=0 // pred_region
    _
  $region53: #{forward.1} parent=0 // pred_fallthru
    _

</llo_original>
